<compile_context>
chip_gen: v6e
topology: v6e:2x2x1
jax: 0.10.0
libtpu: 0.0.40
codegen_flags: <defaults>
</compile_context>

<pallas_src>
import functools
import math

import jax
import jax.numpy as jnp
from jax.experimental import pallas as pl
from jax.experimental.pallas import tpu as pltpu


# ----------------------- configuration (small, synthetic) -----------------------
BATCH = 2
SEQ = 8
HIDDEN = 32
NUM_HEADS = 4
HEAD_DIM = HIDDEN // NUM_HEADS
INTERMEDIATE = 4 * HIDDEN
RMS_EPS = 1e-6
# hidden_act = "silu"


# ---------------------------------- kernel ----------------------------------
def _make_kernel(bb, seq, hidden, num_heads, head_dim, eps):
    """bb = batch elements processed per grid step (static)."""
    T = bb * seq                                  # rows of the flattened slab
    finfo_min = float(jnp.finfo(jnp.float32).min)

    def kernel(x_ref, mask_ref, wq_ref, wk_ref, wv_ref, wo_ref,
               wup_ref, wdown_ref, out_ref):
        # ---- load activations, flatten (bb, S, H) -> (bb*S, H) (major-only) ----
        x = x_ref[...].astype(jnp.float32).reshape(T, hidden)
        mask = mask_ref[0].astype(jnp.float32)                 # (T, T) block-diag additive mask

        # ---- input RMSNorm (gain folded into per-head Q/K/V weights) ----
        var = jnp.mean(x * x, axis=-1, keepdims=True)
        xn = x * jax.lax.rsqrt(var + eps)

        # ---- head-batched Q/K/V projections: heads arrive on a leading batch
        #      dim directly from the matmul (no lane slices / concats) ----
        xnb = jnp.broadcast_to(xn[None], (num_heads, T, hidden))   # (nh, T, H)
        qh = jnp.einsum("htc,hcd->htd", xnb, wq_ref[...],
                        preferred_element_type=jnp.float32)        # (nh, T, hd), pre-scaled
        kh = jnp.einsum("htc,hcd->htd", xnb, wk_ref[...],
                        preferred_element_type=jnp.float32)
        vh = jnp.einsum("htc,hcd->htd", xnb, wv_ref[...],
                        preferred_element_type=jnp.float32)

        # ---- attention over the flattened (bb*S) row axis; cross-batch pairs
        #      are killed exactly by the block-diagonal additive mask ----
        s = jnp.einsum("hqd,hkd->hqk", qh, kh,
                       preferred_element_type=jnp.float32)         # (nh, T, T)
        s = s + mask                                               # broadcast over heads
        s = jnp.maximum(s, finfo_min)                              # torch.max clamp semantics
        s = s - jnp.max(s, axis=-1, keepdims=True)
        p = jnp.exp(s)
        p = p * pl.reciprocal(jnp.sum(p, axis=-1, keepdims=True), approx=True)  # EUP slot

        o = jnp.einsum("hqk,hkd->hqd", p, vh,
                       preferred_element_type=jnp.float32)         # (nh, T, hd)

        # ---- per-head o_proj partial sums; summing over heads replaces the
        #      head-merge concat + 2D o_proj ----
        attn_p = jnp.einsum("hqd,hdc->hqc", o, wo_ref[...],
                            preferred_element_type=jnp.float32)    # (nh, T, H)
        attn = attn_p[0]
        for h in range(1, num_heads):
            attn = attn + attn_p[h]

        x = x + attn                                               # residual 1

        # ---- post-attention RMSNorm (gain folded into wup) + MLP ----
        var2 = jnp.mean(x * x, axis=-1, keepdims=True)
        xn2 = x * jax.lax.rsqrt(var2 + eps)
        up = jnp.dot(xn2, wup_ref[...], preferred_element_type=jnp.float32)   # (T, 4H)
        act = up * jax.nn.sigmoid(up)                                          # SiLU
        down = jnp.dot(act, wdown_ref[...], preferred_element_type=jnp.float32)

        out_ref[...] = (x + down).reshape(bb, seq, hidden).astype(out_ref.dtype)

    return kernel


# ---------------------------------- wrapper ----------------------------------
@functools.partial(jax.jit, static_argnames=("batch_block",))
def encoder_layer(x, attention_mask, params, *, batch_block):
    B, S, H = x.shape
    bb = batch_block
    assert B % bb == 0
    nblk = B // bb
    neg = float(jnp.finfo(jnp.float32).min)
    scale = 1.0 / math.sqrt(HEAD_DIM)

    # ----- wrapper-side weight prep (plain XLA, once, outside the kernel) -----
    # nn.Linear stores (out, in); pre-transpose to (in, out), fold the RMSNorm
    # gains into the first matmul that consumes each normalized activation, and
    # fold the 1/sqrt(head_dim) softmax scale into the Q columns.  Q/K/V/O are
    # reshaped per-head so heads become a batch dim of the in-kernel einsums.
    g1 = params["ln1_w"].reshape(-1).astype(jnp.float32)           # (H,)
    g2 = params["ln2_w"].reshape(-1).astype(jnp.float32)
    wq_h = (params["wq"].T * (g1[:, None] * scale)).reshape(H, NUM_HEADS, HEAD_DIM)
    wq_h = wq_h.transpose(1, 0, 2)                                  # (nh, H, hd)
    wk_h = (params["wk"].T * g1[:, None]).reshape(H, NUM_HEADS, HEAD_DIM).transpose(1, 0, 2)
    wv_h = (params["wv"].T * g1[:, None]).reshape(H, NUM_HEADS, HEAD_DIM).transpose(1, 0, 2)
    wo_h = params["wo"].T.reshape(NUM_HEADS, HEAD_DIM, H)           # (nh, hd, H)
    wup_t = params["wup"].T * g2[:, None]                           # (H, 4H)
    wdown_t = params["wdown"].T                                     # (4H, H)

    # ----- block-diagonal additive mask over the flattened (bb*S) row axis -----
    m = attention_mask[:, 0].astype(jnp.float32).reshape(nblk, bb, S, S)
    blockeye = jnp.eye(bb, dtype=bool)[None, :, None, :, None]      # (1, bb, 1, bb, 1)
    big = jnp.where(blockeye, m[:, :, :, None, :], neg)             # (nblk, bb, S, bb, S)
    big_mask = big.reshape(nblk, bb * S, bb * S)

    kernel = _make_kernel(bb, S, H, NUM_HEADS, HEAD_DIM, RMS_EPS)

    def full(a):
        return pl.BlockSpec(a.shape, lambda g, nd=a.ndim: (0,) * nd)

    # advisory scheduler hint (helps XLA overlap surrounding ops)
    flops = 2 * (3 * B * S * H * H
                 + 2 * NUM_HEADS * nblk * (bb * S) ** 2 * HEAD_DIM
                 + B * S * H * H
                 + 2 * B * S * H * INTERMEDIATE)
    transcendentals = (NUM_HEADS * nblk * (bb * S) ** 2
                       + B * S * INTERMEDIATE + 2 * B * S)
    bytes_accessed = 4 * (2 * x.size + big_mask.size + wq_h.size + wk_h.size
                          + wv_h.size + wo_h.size + wup_t.size + wdown_t.size)

    return pl.pallas_call(
        kernel,
        out_shape=jax.ShapeDtypeStruct((B, S, H), x.dtype),
        grid_spec=pltpu.PrefetchScalarGridSpec(
            num_scalar_prefetch=0,
            grid=(nblk,),
            in_specs=[
                pl.BlockSpec((bb, S, H), lambda g: (g, 0, 0)),            # x
                pl.BlockSpec((1, bb * S, bb * S), lambda g: (g, 0, 0)),   # block-diag mask
                full(wq_h), full(wk_h), full(wv_h), full(wo_h),
                full(wup_t), full(wdown_t),
            ],
            out_specs=pl.BlockSpec((bb, S, H), lambda g: (g, 0, 0)),
        ),
        compiler_params=pltpu.CompilerParams(
            dimension_semantics=("parallel",)),
        cost_estimate=pl.CostEstimate(
            flops=int(flops),
            transcendentals=int(transcendentals),
            bytes_accessed=int(bytes_accessed)),
    )(x, big_mask, wq_h, wk_h, wv_h, wo_h, wup_t, wdown_t)


# ----------------------------- pure-JAX reference -----------------------------
def reference(x, mask, p):
    def rmsnorm(h, w):
        var = jnp.mean(h.astype(jnp.float32) ** 2, axis=-1, keepdims=True)
        return w * (h * jax.lax.rsqrt(var + RMS_EPS))

    residual = x
    h = rmsnorm(x, p["ln1_w"][0])
    q = h @ p["wq"].T
    k = h @ p["wk"].T
    v = h @ p["wv"].T
    B, S, H = x.shape
    q = q.reshape(B, S, NUM_HEADS, HEAD_DIM).transpose(0, 2, 1, 3)
    k = k.reshape(B, S, NUM_HEADS, HEAD_DIM).transpose(0, 2, 1, 3)
    v = v.reshape(B, S, NUM_HEADS, HEAD_DIM).transpose(0, 2, 1, 3)
    s = jnp.einsum("bhqd,bhkd->bhqk", q, k) / math.sqrt(HEAD_DIM)
    s = s + mask
    s = jnp.maximum(s, jnp.finfo(jnp.float32).min)
    w = jax.nn.softmax(s.astype(jnp.float32), axis=-1)
    o = jnp.einsum("bhqk,bhkd->bhqd", w, v).transpose(0, 2, 1, 3).reshape(B, S, H)
    o = o @ p["wo"].T
    h = residual + o
    residual = h
    h = rmsnorm(h, p["ln2_w"][0])
    up = h @ p["wup"].T
    h = (up * jax.nn.sigmoid(up)) @ p["wdown"].T
    return residual + h


# ------------------------------------ main ------------------------------------
if __name__ == "__main__":
    key = jax.random.PRNGKey(0)
    ks = jax.random.split(key, 10)

    def init(k, shape, fan_in):
        bound = 1.0 / math.sqrt(fan_in)
        return jax.random.uniform(k, shape, jnp.float32, -bound, bound)

    params = {
        "ln1_w": jax.random.uniform(ks[7], (1, HIDDEN), jnp.float32, 0.5, 1.5),
        "ln2_w": jax.random.uniform(ks[8], (1, HIDDEN), jnp.float32, 0.5, 1.5),
        "wq": init(ks[0], (HIDDEN, HIDDEN), HIDDEN),
        "wk": init(ks[1], (HIDDEN, HIDDEN), HIDDEN),
        "wv": init(ks[2], (HIDDEN, HIDDEN), HIDDEN),
        "wo": init(ks[3], (HIDDEN, HIDDEN), HIDDEN),
        "wup": init(ks[4], (INTERMEDIATE, HIDDEN), HIDDEN),
        "wdown": init(ks[5], (HIDDEN, INTERMEDIATE), INTERMEDIATE),
    }

    x = jax.random.normal(ks[6], (BATCH, SEQ, HIDDEN), jnp.float32)
    # additive attention mask (B, 1, S, S); mask the last two key positions of
    # batch element 1 (padding-style) so the mask path is actually exercised.
    attention_mask = jnp.zeros((BATCH, 1, SEQ, SEQ), jnp.float32)
    attention_mask = attention_mask.at[1, :, :, SEQ - 2:].set(-1e9)

    # Single grid step (bb = BATCH): overhead-bound at this size; use bb=1 +
    # "parallel" for dual-TC sharding only once per-element work is >= a few us.
    out = encoder_layer(x, attention_mask, params, batch_block=BATCH)
    out = jax.block_until_ready(out)

    ref = reference(x, attention_mask, params)
    assert out.shape == (BATCH, SEQ, HIDDEN)
    # Remaining error sources: EUP approximate reciprocal in the softmax
    # denominator and the RMSNorm-gain / softmax-scale weight folds (different
    # rounding).  Expected ~1e-4..1e-3; tolerance tightened accordingly.
    assert jnp.allclose(out, ref, atol=2e-3, rtol=2e-3), (
        f"max abs err = {jnp.max(jnp.abs(out - ref))}")

    print("KERNEL_OK")
</pallas_src>

<mosaic_0001>
module attributes {stable_mosaic.version = 11 : i64} {
  func.func @kernel(%arg0: i32, %arg1: memref<2x8x32xf32, #tpu.memory_space<vmem>>, %arg2: memref<1x16x16xf32, #tpu.memory_space<vmem>>, %arg3: memref<4x32x8xf32, #tpu.memory_space<vmem>>, %arg4: memref<4x32x8xf32, #tpu.memory_space<vmem>>, %arg5: memref<4x32x8xf32, #tpu.memory_space<vmem>>, %arg6: memref<4x8x32xf32, #tpu.memory_space<vmem>>, %arg7: memref<32x128xf32, #tpu.memory_space<vmem>>, %arg8: memref<128x32xf32, #tpu.memory_space<vmem>>, %arg9: memref<2x8x32xf32, #tpu.memory_space<vmem>>) attributes {dimension_semantics = [#tpu.dimension_semantics<parallel>], iteration_bounds = array<i64: 1>, scalar_prefetch = 0 : i64, scratch_operands = 0 : i64, tpu.core_type = #tpu.core_type<tc>, window_params = [{transform_indices = @transform_0, window_bounds = array<i64: 2, 8, 32>}, {transform_indices = @transform_1, window_bounds = array<i64: 1, 16, 16>}, {pipeline_mode = #tpu.pipeline_mode<synchronous>, transform_indices = @transform_2, window_bounds = array<i64: 4, 32, 8>}, {pipeline_mode = #tpu.pipeline_mode<synchronous>, transform_indices = @transform_3, window_bounds = array<i64: 4, 32, 8>}, {pipeline_mode = #tpu.pipeline_mode<synchronous>, transform_indices = @transform_4, window_bounds = array<i64: 4, 32, 8>}, {pipeline_mode = #tpu.pipeline_mode<synchronous>, transform_indices = @transform_5, window_bounds = array<i64: 4, 8, 32>}, {pipeline_mode = #tpu.pipeline_mode<synchronous>, transform_indices = @transform_6, window_bounds = array<i64: 32, 128>}, {pipeline_mode = #tpu.pipeline_mode<synchronous>, transform_indices = @transform_7, window_bounds = array<i64: 128, 32>}, {transform_indices = @transform_8, window_bounds = array<i64: 2, 8, 32>}]} {
    %c0 = arith.constant 0 : index
    %c0_0 = arith.constant 0 : index
    %c0_1 = arith.constant 0 : index
    %0 = vector.load %arg1[%c0, %c0_0, %c0_1] : memref<2x8x32xf32, #tpu.memory_space<vmem>>, vector<2x8x32xf32>
    %1 = vector.shape_cast %0 : vector<2x8x32xf32> to vector<16x32xf32>
    %c0_2 = arith.constant 0 : index
    %c0_3 = arith.constant 0 : index
    %c0_4 = arith.constant 0 : index
    %2 = vector.load %arg2[%c0_2, %c0_3, %c0_4] : memref<1x16x16xf32, #tpu.memory_space<vmem>>, vector<1x16x16xf32>
    %3 = vector.shape_cast %2 : vector<1x16x16xf32> to vector<16x16xf32>
    %4 = arith.mulf %1, %1 : vector<16x32xf32>
    %cst = arith.constant dense<0.000000e+00> : vector<16xf32>
    %5 = vector.multi_reduction <add>, %4, %cst [1] : vector<16x32xf32> to vector<16xf32>
    %6 = vector.shape_cast %5 : vector<16xf32> to vector<16x1xf32>
    %cst_5 = arith.constant 3.200000e+01 : f32
    %7 = vector.broadcast %cst_5 : f32 to vector<16x1xf32>
    %8 = arith.divf %6, %7 : vector<16x1xf32>
    %cst_6 = arith.constant 9.99999997E-7 : f32
    %9 = vector.broadcast %cst_6 : f32 to vector<16x1xf32>
    %10 = arith.addf %8, %9 : vector<16x1xf32>
    %11 = math.rsqrt %10 : vector<16x1xf32>
    %12 = vector.broadcast %11 : vector<16x1xf32> to vector<16x32xf32>
    %13 = arith.mulf %1, %12 : vector<16x32xf32>
    %14 = vector.shape_cast %13 : vector<16x32xf32> to vector<1x16x32xf32>
    %15 = vector.shape_cast %14 : vector<1x16x32xf32> to vector<1x16x32xf32>
    %16 = vector.broadcast %15 : vector<1x16x32xf32> to vector<4x16x32xf32>
    %c0_7 = arith.constant 0 : index
    %c0_8 = arith.constant 0 : index
    %c0_9 = arith.constant 0 : index
    %17 = vector.load %arg3[%c0_7, %c0_8, %c0_9] : memref<4x32x8xf32, #tpu.memory_space<vmem>>, vector<4x32x8xf32>
    "tpu.trace_start"() <{level = 10 : i32, message = "htc,hcd->htd"}> : () -> ()
    %cst_10 = arith.constant dense<0.000000e+00> : vector<4x16x8xf32>
    %18 = tpu.matmul %16, %17, %cst_10 {dimension_numbers = #tpu.dot_dimension_numbers<[2], [1], [1], [2], [0, 0, 0, 1, 1, 2], [0], [0]>} : vector<4x16x32xf32>, vector<4x32x8xf32>, vector<4x16x8xf32> -> vector<4x16x8xf32>
    "tpu.trace_stop"() : () -> ()
    %c0_11 = arith.constant 0 : index
    %c0_12 = arith.constant 0 : index
    %c0_13 = arith.constant 0 : index
    %19 = vector.load %arg4[%c0_11, %c0_12, %c0_13] : memref<4x32x8xf32, #tpu.memory_space<vmem>>, vector<4x32x8xf32>
    "tpu.trace_start"() <{level = 10 : i32, message = "htc,hcd->htd"}> : () -> ()
    %cst_14 = arith.constant dense<0.000000e+00> : vector<4x16x8xf32>
    %20 = tpu.matmul %16, %19, %cst_14 {dimension_numbers = #tpu.dot_dimension_numbers<[2], [1], [1], [2], [0, 0, 0, 1, 1, 2], [0], [0]>} : vector<4x16x32xf32>, vector<4x32x8xf32>, vector<4x16x8xf32> -> vector<4x16x8xf32>
    "tpu.trace_stop"() : () -> ()
    %c0_15 = arith.constant 0 : index
    %c0_16 = arith.constant 0 : index
    %c0_17 = arith.constant 0 : index
    %21 = vector.load %arg5[%c0_15, %c0_16, %c0_17] : memref<4x32x8xf32, #tpu.memory_space<vmem>>, vector<4x32x8xf32>
    "tpu.trace_start"() <{level = 10 : i32, message = "htc,hcd->htd"}> : () -> ()
    %cst_18 = arith.constant dense<0.000000e+00> : vector<4x16x8xf32>
    %22 = tpu.matmul %16, %21, %cst_18 {dimension_numbers = #tpu.dot_dimension_numbers<[2], [1], [1], [2], [0, 0, 0, 1, 1, 2], [0], [0]>} : vector<4x16x32xf32>, vector<4x32x8xf32>, vector<4x16x8xf32> -> vector<4x16x8xf32>
    "tpu.trace_stop"() : () -> ()
    "tpu.trace_start"() <{level = 10 : i32, message = "hqd,hkd->hqk"}> : () -> ()
    %cst_19 = arith.constant dense<0.000000e+00> : vector<4x16x16xf32>
    %23 = tpu.matmul %18, %20, %cst_19 {dimension_numbers = #tpu.dot_dimension_numbers<[2], [2], [1], [1], [0, 0, 0, 1, 1, 1], [0], [0]>} : vector<4x16x8xf32>, vector<4x16x8xf32>, vector<4x16x16xf32> -> vector<4x16x16xf32>
    "tpu.trace_stop"() : () -> ()
    %24 = vector.shape_cast %3 : vector<16x16xf32> to vector<1x16x16xf32>
    %25 = vector.broadcast %24 : vector<1x16x16xf32> to vector<4x16x16xf32>
    %26 = arith.addf %23, %25 : vector<4x16x16xf32>
    %cst_20 = arith.constant -3.40282347E+38 : f32
    %27 = vector.broadcast %cst_20 : f32 to vector<4x16x16xf32>
    %28 = arith.maximumf %26, %27 : vector<4x16x16xf32>
    %cst_21 = arith.constant dense<0xFF800000> : vector<4x16xf32>
    %29 = vector.multi_reduction <maximumf>, %28, %cst_21 [2] : vector<4x16x16xf32> to vector<4x16xf32>
    %30 = vector.shape_cast %29 : vector<4x16xf32> to vector<4x16x1xf32>
    %31 = vector.broadcast %30 : vector<4x16x1xf32> to vector<4x16x16xf32>
    %32 = arith.subf %28, %31 : vector<4x16x16xf32>
    %33 = math.exp %32 : vector<4x16x16xf32>
    %cst_22 = arith.constant dense<0.000000e+00> : vector<4x16xf32>
    %34 = vector.multi_reduction <add>, %33, %cst_22 [2] : vector<4x16x16xf32> to vector<4x16xf32>
    %35 = vector.shape_cast %34 : vector<4x16xf32> to vector<4x16x1xf32>
    %36 = tpu.reciprocal %35 {approx = true} : vector<4x16x1xf32> -> vector<4x16x1xf32>
    %37 = vector.broadcast %36 : vector<4x16x1xf32> to vector<4x16x16xf32>
    %38 = arith.mulf %33, %37 : vector<4x16x16xf32>
    "tpu.trace_start"() <{level = 10 : i32, message = "hqk,hkd->hqd"}> : () -> ()
    %cst_23 = arith.constant dense<0.000000e+00> : vector<4x16x8xf32>
    %39 = tpu.matmul %38, %22, %cst_23 {dimension_numbers = #tpu.dot_dimension_numbers<[2], [1], [1], [2], [0, 0, 0, 1, 1, 2], [0], [0]>} : vector<4x16x16xf32>, vector<4x16x8xf32>, vector<4x16x8xf32> -> vector<4x16x8xf32>
    "tpu.trace_stop"() : () -> ()
    %c0_24 = arith.constant 0 : index
    %c0_25 = arith.constant 0 : index
    %c0_26 = arith.constant 0 : index
    %40 = vector.load %arg6[%c0_24, %c0_25, %c0_26] : memref<4x8x32xf32, #tpu.memory_space<vmem>>, vector<4x8x32xf32>
    "tpu.trace_start"() <{level = 10 : i32, message = "hqd,hdc->hqc"}> : () -> ()
    %cst_27 = arith.constant dense<0.000000e+00> : vector<4x16x32xf32>
    %41 = tpu.matmul %39, %40, %cst_27 {dimension_numbers = #tpu.dot_dimension_numbers<[2], [1], [1], [2], [0, 0, 0, 1, 1, 2], [0], [0]>} : vector<4x16x8xf32>, vector<4x8x32xf32>, vector<4x16x32xf32> -> vector<4x16x32xf32>
    "tpu.trace_stop"() : () -> ()
    %42 = vector.extract_strided_slice %41 {offsets = [0, 0, 0], sizes = [1, 16, 32], strides = [1, 1, 1]} : vector<4x16x32xf32> to vector<1x16x32xf32>
    %43 = vector.shape_cast %42 : vector<1x16x32xf32> to vector<16x32xf32>
    %44 = vector.extract_strided_slice %41 {offsets = [1, 0, 0], sizes = [1, 16, 32], strides = [1, 1, 1]} : vector<4x16x32xf32> to vector<1x16x32xf32>
    %45 = vector.shape_cast %44 : vector<1x16x32xf32> to vector<16x32xf32>
    %46 = arith.addf %43, %45 : vector<16x32xf32>
    %47 = vector.extract_strided_slice %41 {offsets = [2, 0, 0], sizes = [1, 16, 32], strides = [1, 1, 1]} : vector<4x16x32xf32> to vector<1x16x32xf32>
    %48 = vector.shape_cast %47 : vector<1x16x32xf32> to vector<16x32xf32>
    %49 = arith.addf %46, %48 : vector<16x32xf32>
    %50 = vector.extract_strided_slice %41 {offsets = [3, 0, 0], sizes = [1, 16, 32], strides = [1, 1, 1]} : vector<4x16x32xf32> to vector<1x16x32xf32>
    %51 = vector.shape_cast %50 : vector<1x16x32xf32> to vector<16x32xf32>
    %52 = arith.addf %49, %51 : vector<16x32xf32>
    %53 = arith.addf %1, %52 : vector<16x32xf32>
    %54 = arith.mulf %53, %53 : vector<16x32xf32>
    %cst_28 = arith.constant dense<0.000000e+00> : vector<16xf32>
    %55 = vector.multi_reduction <add>, %54, %cst_28 [1] : vector<16x32xf32> to vector<16xf32>
    %56 = vector.shape_cast %55 : vector<16xf32> to vector<16x1xf32>
    %cst_29 = arith.constant 3.200000e+01 : f32
    %57 = vector.broadcast %cst_29 : f32 to vector<16x1xf32>
    %58 = arith.divf %56, %57 : vector<16x1xf32>
    %cst_30 = arith.constant 9.99999997E-7 : f32
    %59 = vector.broadcast %cst_30 : f32 to vector<16x1xf32>
    %60 = arith.addf %58, %59 : vector<16x1xf32>
    %61 = math.rsqrt %60 : vector<16x1xf32>
    %62 = vector.broadcast %61 : vector<16x1xf32> to vector<16x32xf32>
    %63 = arith.mulf %53, %62 : vector<16x32xf32>
    %c0_31 = arith.constant 0 : index
    %c0_32 = arith.constant 0 : index
    %64 = vector.load %arg7[%c0_31, %c0_32] : memref<32x128xf32, #tpu.memory_space<vmem>>, vector<32x128xf32>
    %cst_33 = arith.constant dense<0.000000e+00> : vector<16x128xf32>
    %65 = tpu.matmul %63, %64, %cst_33 {dimension_numbers = #tpu.dot_dimension_numbers<[1], [0], [0], [1], [0, 0, 1, 1], [], []>} : vector<16x32xf32>, vector<32x128xf32>, vector<16x128xf32> -> vector<16x128xf32>
    %66 = arith.negf %65 : vector<16x128xf32>
    %67 = math.exp %66 : vector<16x128xf32>
    %cst_34 = arith.constant 1.000000e+00 : f32
    %68 = vector.broadcast %cst_34 : f32 to vector<16x128xf32>
    %69 = arith.addf %68, %67 : vector<16x128xf32>
    %70 = arith.divf %68, %69 : vector<16x128xf32>
    %71 = arith.mulf %65, %70 : vector<16x128xf32>
    %c0_35 = arith.constant 0 : index
    %c0_36 = arith.constant 0 : index
    %72 = vector.load %arg8[%c0_35, %c0_36] : memref<128x32xf32, #tpu.memory_space<vmem>>, vector<128x32xf32>
    %cst_37 = arith.constant dense<0.000000e+00> : vector<16x32xf32>
    %73 = tpu.matmul %71, %72, %cst_37 {dimension_numbers = #tpu.dot_dimension_numbers<[1], [0], [0], [1], [0, 0, 1, 1], [], []>} : vector<16x128xf32>, vector<128x32xf32>, vector<16x32xf32> -> vector<16x32xf32>
    %74 = arith.addf %53, %73 : vector<16x32xf32>
    %75 = vector.shape_cast %74 : vector<16x32xf32> to vector<2x8x32xf32>
    %c0_38 = arith.constant 0 : index
    %c0_39 = arith.constant 0 : index
    %c0_40 = arith.constant 0 : index
    %76 = vector.load %arg9[%c0_38, %c0_39, %c0_40] : memref<2x8x32xf32, #tpu.memory_space<vmem>>, vector<2x8x32xf32>
    tpu.vector_store %arg9[%c0_38, %c0_39, %c0_40], %75 {strides = array<i32>} : memref<2x8x32xf32, #tpu.memory_space<vmem>>, vector<2x8x32xf32>,
    return
  }
  func.func @transform_0(%arg0: i32) -> (i32, i32, i32) {
    %c0_i32 = arith.constant 0 : i32
    %c0_i32_0 = arith.constant 0 : i32
    %c0_i32_1 = arith.constant 0 : i32
    return %arg0, %c0_i32, %c0_i32_0 : i32, i32, i32
  }
  func.func @transform_1(%arg0: i32) -> (i32, i32, i32) {
    %c0_i32 = arith.constant 0 : i32
    %c0_i32_0 = arith.constant 0 : i32
    %c0_i32_1 = arith.constant 0 : i32
    return %arg0, %c0_i32, %c0_i32_0 : i32, i32, i32
  }
  func.func @transform_2(%arg0: i32) -> (i32, i32, i32) {
    %c0_i32 = arith.constant 0 : i32
    %c0_i32_0 = arith.constant 0 : i32
    %c0_i32_1 = arith.constant 0 : i32
    %c0_i32_2 = arith.constant 0 : i32
    return %c0_i32, %c0_i32_0, %c0_i32_1 : i32, i32, i32
  }
  func.func @transform_3(%arg0: i32) -> (i32, i32, i32) {
    %c0_i32 = arith.constant 0 : i32
    %c0_i32_0 = arith.constant 0 : i32
    %c0_i32_1 = arith.constant 0 : i32
    %c0_i32_2 = arith.constant 0 : i32
    return %c0_i32, %c0_i32_0, %c0_i32_1 : i32, i32, i32
  }
  func.func @transform_4(%arg0: i32) -> (i32, i32, i32) {
    %c0_i32 = arith.constant 0 : i32
    %c0_i32_0 = arith.constant 0 : i32
    %c0_i32_1 = arith.constant 0 : i32
    %c0_i32_2 = arith.constant 0 : i32
    return %c0_i32, %c0_i32_0, %c0_i32_1 : i32, i32, i32
  }
  func.func @transform_5(%arg0: i32) -> (i32, i32, i32) {
    %c0_i32 = arith.constant 0 : i32
    %c0_i32_0 = arith.constant 0 : i32
    %c0_i32_1 = arith.constant 0 : i32
    %c0_i32_2 = arith.constant 0 : i32
    return %c0_i32, %c0_i32_0, %c0_i32_1 : i32, i32, i32
  }
  func.func @transform_6(%arg0: i32) -> (i32, i32) {
    %c0_i32 = arith.constant 0 : i32
    %c0_i32_0 = arith.constant 0 : i32
    %c0_i32_1 = arith.constant 0 : i32
    return %c0_i32, %c0_i32_0 : i32, i32
  }
  func.func @transform_7(%arg0: i32) -> (i32, i32) {
    %c0_i32 = arith.constant 0 : i32
    %c0_i32_0 = arith.constant 0 : i32
    %c0_i32_1 = arith.constant 0 : i32
    return %c0_i32, %c0_i32_0 : i32, i32
  }
  func.func @transform_8(%arg0: i32) -> (i32, i32, i32) {
    %c0_i32 = arith.constant 0 : i32
    %c0_i32_0 = arith.constant 0 : i32
    %c0_i32_1 = arith.constant 0 : i32
    return %arg0, %c0_i32, %c0_i32_0 : i32, i32, i32
  }
}

</mosaic_0001>

<llo_original>
// kernel: encoder_layer.1
$region0: #{encoder_layer.1}
  #allocation0 [shape = 'u32[]', space=smem, size = 0x4, offset = 0x4, fixed_abs, tag = 'smem constant byte address 0x4 - core index']
  #allocation1 [shape = 'u32[144,128]{1,0:T(1,128)}', space=vmem, size = 0x12000, scoped, tag = 'internal scratch']
  %s0 = inlined_call_operand.vmem [shape: f32[2,8,32], index: 0, kind: input, shape index: {}]
  %s1 = inlined_call_operand.vmem [shape: f32[1,16,16], index: 1, kind: input, shape index: {}]
  %s2 = inlined_call_operand.vmem [shape: f32[4,32,8], index: 2, kind: input, shape index: {}]
  %s3 = inlined_call_operand.vmem [shape: f32[4,32,8], index: 3, kind: input, shape index: {}]
  %s4 = inlined_call_operand.vmem [shape: f32[4,32,8], index: 4, kind: input, shape index: {}]
  %s5 = inlined_call_operand.vmem [shape: f32[4,8,32], index: 5, kind: input, shape index: {}]
  %s6 = inlined_call_operand.vmem [shape: f32[32,128], index: 6, kind: input, shape index: {}]
  %s7 = inlined_call_operand.vmem [shape: f32[128,32], index: 7, kind: input, shape index: {}]
  %s8 = inlined_call_operand.hbm [shape: f32[2,8,32], index: 8, kind: output, shape index: {}]
  %s9 = sld [smem:[#allocation0]]
  $region42: #{encoder_layer.1} parent=0
    _
  %s11 = ssub.s32 1, %s9
  %s12 = scalar_select 0, %s11, %s9
  $region1: #{encoder_layer.1} parent=0
    #allocation2 [shape = 'u8[8192]{0}', space=vmem, size = 0x2000, scoped, tag = 'output window, operand 0, single buffered']
    #allocation3 [shape = 's32[1]{0}', space=sflag, size = 0x4, scoped, tag = 'scoped memory for encoder_layer.1']
    %13 = vsyncpa [#allocation3], 0
    // Predicated region
    $region2: #{encoder_layer.1} parent=1 // pred_check
      _
    $region3: #{encoder_layer.1} parent=1 // pred_check_branch
      %15 = sbr.rel (0) target = $region5
    $region4: #{encoder_layer.1} parent=1 // pred_region
      _
    $region5: #{encoder_layer.1} parent=1 // pred_fallthru
      _
    // Predicated region
    $region6: #{encoder_layer.1} parent=1 // pred_check
      _
    $region7: #{encoder_layer.1} parent=1 // pred_check_branch
      %17 = sbr.rel (0) target = $region9
    $region8: #{encoder_layer.1} parent=1 // pred_region
      _
    $region9: #{encoder_layer.1} parent=1 // pred_fallthru
      _
    // Predicated region
    $region10: #{encoder_layer.1} parent=1 // pred_check
      _
    $region11: #{encoder_layer.1} parent=1 // pred_check_branch
      %19 = sbr.rel (0) target = $region13
    $region12: #{encoder_layer.1} parent=1 // pred_region
      _
    $region13: #{encoder_layer.1} parent=1 // pred_fallthru
      _
    // Predicated region
    $region14: #{encoder_layer.1} parent=1 // pred_check
      _
    $region15: #{encoder_layer.1} parent=1 // pred_check_branch
      %21 = sbr.rel (0) target = $region17
    $region16: #{encoder_layer.1} parent=1 // pred_region
      _
    $region17: #{encoder_layer.1} parent=1 // pred_fallthru
      _
    // Predicated region
    $region18: #{encoder_layer.1} parent=1 // pred_check
      _
    $region19: #{encoder_layer.1} parent=1 // pred_check_branch
      %23 = sbr.rel (0) target = $region21
    $region20: #{encoder_layer.1} parent=1 // pred_region
      _
    $region21: #{encoder_layer.1} parent=1 // pred_fallthru
      _
    // Predicated region
    $region22: #{encoder_layer.1} parent=1 // pred_check
      _
    $region23: #{encoder_layer.1} parent=1 // pred_check_branch
      %25 = sbr.rel (0) target = $region25
    $region24: #{encoder_layer.1} parent=1 // pred_region
      _
    $region25: #{encoder_layer.1} parent=1 // pred_fallthru
      _
    // Predicated region
    $region26: #{encoder_layer.1} parent=1 // pred_check
      _
    $region27: #{encoder_layer.1} parent=1 // pred_check_branch
      %27 = sbr.rel (0) target = $region29
    $region28: #{encoder_layer.1} parent=1 // pred_region
      _
    $region29: #{encoder_layer.1} parent=1 // pred_fallthru
      _
    // Predicated region
    $region30: #{encoder_layer.1} parent=1 // pred_check
      _
    $region31: #{encoder_layer.1} parent=1 // pred_check_branch
      %29 = sbr.rel (0) target = $region33
    $region32: #{encoder_layer.1} parent=1 // pred_region
      _
    $region33: #{encoder_layer.1} parent=1 // pred_fallthru
      _
    %v30 = vld [vmem:[%s0] sm:$0xff]
    %v31 = vld [vmem:[%s0 + $0x8] sm:$0xff]
    %v32 = vld [vmem:[%s1] sm:$0xff]
    %v33 = vld [vmem:[%s1 + $0x8] sm:$0xff]
    %v34 = vmul.f32 %v30, %v30
    %v35 = vmul.f32 %v31, %v31
    %vm36 = vcmask 261120
    %v37 = vsel %vm36, %v34, 0.0
    %38 = vadd.xlane.f32.xlu0 %v37
    %v39 = vpop.xlane.xlu0 %38
    %v40 = vsel %vm36, %v35, 0.0
    %41 = vadd.xlane.f32.xlu0 %v40
    %v42 = vpop.xlane.xlu0 %41
    %v43 = vrcp.pop 32.0
    %v44 = vmul.f32 %v39, %v43
    %v45 = vmul.f32 %v42, %v43
    %v46 = vadd.f32 %v44, 1e-06
    %v47 = vadd.f32 %v45, 1e-06
    %v48 = vrsqrt.pop %v46
    %v49 = vrsqrt.pop %v47
    %v50 = vmul.f32 %v30, %v48
    %v51 = vmul.f32 %v31, %v49
    %v52 = vld [vmem:[%s2] sm:$0xff]
    %v53 = vld [vmem:[%s2 + $0x8] sm:$0xff]
    %v54 = vld [vmem:[%s2 + $0x10] sm:$0xff]
    %v55 = vld [vmem:[%s2 + $0x18] sm:$0xff]
    %v56 = vld [vmem:[%s2 + $0x20] sm:$0xff]
    %v57 = vld [vmem:[%s2 + $0x28] sm:$0xff]
    %v58 = vld [vmem:[%s2 + $0x30] sm:$0xff]
    %v59 = vld [vmem:[%s2 + $0x38] sm:$0xff]
    %v60 = vld [vmem:[%s2 + $0x40] sm:$0xff]
    %v61 = vld [vmem:[%s2 + $0x48] sm:$0xff]
    %v62 = vld [vmem:[%s2 + $0x50] sm:$0xff]
    %v63 = vld [vmem:[%s2 + $0x58] sm:$0xff]
    %v64 = vld [vmem:[%s2 + $0x60] sm:$0xff]
    %v65 = vld [vmem:[%s2 + $0x68] sm:$0xff]
    %v66 = vld [vmem:[%s2 + $0x70] sm:$0xff]
    %v67 = vld [vmem:[%s2 + $0x78] sm:$0xff]
    %v69 = vsel %vm36, %v50, 0
    %v72 = vsel %vm36, %v51, 0
    %74 = vmatprep.subr.mxu0 0.0
    %75 = vmatpush1.msra.mxu0 0.0
    %76 = vmatprep.subr.mxu0 0.0
    %77 = vmatpush1.msra.mxu0 0.0
    %78 = vmatprep.subr.mxu0 0.0
    %79 = vmatpush1.msra.mxu0 0.0
    %80 = vmatprep.subr.mxu0 0.0
    %81 = vmatpush1.msra.mxu0 0.0
    %82 = vmatprep.subr.mxu0 0.0
    %83 = vmatpush1.msra.mxu0 0.0
    %84 = vmatprep.subr.mxu0 0.0
    %85 = vmatpush1.msra.mxu0 0.0
    %86 = vmatprep.subr.mxu0 0.0
    %87 = vmatpush1.msra.mxu0 0.0
    %88 = vmatprep.subr.mxu0 0.0
    %89 = vmatpush1.msra.mxu0 0.0
    %90 = vmatprep.subr.mxu0 0.0
    %91 = vmatpush1.msra.mxu0 0.0
    %92 = vmatprep.subr.mxu0 0.0
    %93 = vmatpush1.msra.mxu0 0.0
    %94 = vmatprep.subr.mxu0 0.0
    %95 = vmatpush1.msra.mxu0 0.0
    %96 = vmatprep.subr.mxu0 0.0
    %97 = vmatpush1.msra.mxu0 0.0
    %98 = vmatprep.subr.mxu0 0.0
    %99 = vmatpush1.msra.mxu0 %v55
    %100 = vmatprep.subr.mxu0 0.0
    %101 = vmatpush1.msra.mxu0 %v54
    %102 = vmatprep.subr.mxu0 0.0
    %103 = vmatpush1.msra.mxu0 %v53
    %104 = vmatprep.subr.mxu0 0.0
    %105 = vmatpush1.msra.mxu0 %v52
    %106 = vmatprep.subr.mxu0 0.0
    %107 = vmatpush2.msra.mxu0 0.0
    %108 = vmatprep.subr.mxu0 0.0
    %109 = vmatpush2.msra.mxu0 0.0
    %110 = vmatprep.subr.mxu0 0.0
    %111 = vmatpush2.msra.mxu0 0.0
    %112 = vmatprep.subr.mxu0 0.0
    %113 = vmatpush2.msra.mxu0 0.0
    %114 = vmatprep.subr.mxu0 0.0
    %115 = vmatpush2.msra.mxu0 0.0
    %116 = vmatprep.subr.mxu0 0.0
    %117 = vmatpush2.msra.mxu0 0.0
    %118 = vmatprep.subr.mxu0 0.0
    %119 = vmatpush2.msra.mxu0 0.0
    %120 = vmatprep.subr.mxu0 0.0
    %121 = vmatpush2.msra.mxu0 0.0
    %122 = vmatprep.subr.mxu0 0.0
    %123 = vmatpush2.msra.mxu0 0.0
    %124 = vmatprep.subr.mxu0 0.0
    %125 = vmatpush2.msra.mxu0 0.0
    %126 = vmatprep.subr.mxu0 0.0
    %127 = vmatpush2.msra.mxu0 0.0
    %128 = vmatprep.subr.mxu0 0.0
    %129 = vmatpush2.msra.mxu0 0.0
    %130 = vmatprep.subr.mxu0 0.0
    %131 = vmatpush2.msra.mxu0 0.0
    %132 = vmatprep.subr.mxu0 0.0
    %133 = vmatpush2.msra.mxu0 0.0
    %134 = vmatprep.subr.mxu0 0.0
    %135 = vmatpush2.msra.mxu0 0.0
    %136 = vmatprep.subr.mxu0 0.0
    %137 = vmatpush2.msra.mxu0 0.0
    %138 = vmatprep.mubr.f32.mxu0 0.0
    %139 = vmatmul.mubr.f32.gmra.mxu0 %v69
    %v140 = vpop.f32.mrf.mxu0
    %v141 = vadd.f32 0.0, %v140
    %v142 = vpop.f32.mrf.mxu0
    %143 = vmatprep.mubr.f32.mxu0 0.0
    %144 = vmatmul.mubr.f32.gmra.mxu0 %v72
    %v145 = vpop.f32.mrf.mxu0
    %v146 = vadd.f32 0.0, %v145
    %v147 = vpop.f32.mrf.mxu0
    %148 = vdwg.mxu0
    %149 = vmatprep.subr.mxu0 0.0
    %150 = vmatpush1.msra.mxu0 0.0
    %151 = vmatprep.subr.mxu0 0.0
    %152 = vmatpush1.msra.mxu0 0.0
    %153 = vmatprep.subr.mxu0 0.0
    %154 = vmatpush1.msra.mxu0 0.0
    %155 = vmatprep.subr.mxu0 0.0
    %156 = vmatpush1.msra.mxu0 0.0
    %157 = vmatprep.subr.mxu0 0.0
    %158 = vmatpush1.msra.mxu0 0.0
    %159 = vmatprep.subr.mxu0 0.0
    %160 = vmatpush1.msra.mxu0 0.0
    %161 = vmatprep.subr.mxu0 0.0
    %162 = vmatpush1.msra.mxu0 0.0
    %163 = vmatprep.subr.mxu0 0.0
    %164 = vmatpush1.msra.mxu0 0.0
    %165 = vmatprep.subr.mxu0 0.0
    %166 = vmatpush1.msra.mxu0 0.0
    %167 = vmatprep.subr.mxu0 0.0
    %168 = vmatpush1.msra.mxu0 0.0
    %169 = vmatprep.subr.mxu0 0.0
    %170 = vmatpush1.msra.mxu0 0.0
    %171 = vmatprep.subr.mxu0 0.0
    %172 = vmatpush1.msra.mxu0 0.0
    %173 = vmatprep.subr.mxu0 0.0
    %174 = vmatpush1.msra.mxu0 %v59
    %175 = vmatprep.subr.mxu0 0.0
    %176 = vmatpush1.msra.mxu0 %v58
    %177 = vmatprep.subr.mxu0 0.0
    %178 = vmatpush1.msra.mxu0 %v57
    %179 = vmatprep.subr.mxu0 0.0
    %180 = vmatpush1.msra.mxu0 %v56
    %181 = vmatprep.subr.mxu0 0.0
    %182 = vmatpush2.msra.mxu0 0.0
    %183 = vmatprep.subr.mxu0 0.0
    %184 = vmatpush2.msra.mxu0 0.0
    %185 = vmatprep.subr.mxu0 0.0
    %186 = vmatpush2.msra.mxu0 0.0
    %187 = vmatprep.subr.mxu0 0.0
    %188 = vmatpush2.msra.mxu0 0.0
    %189 = vmatprep.subr.mxu0 0.0
    %190 = vmatpush2.msra.mxu0 0.0
    %191 = vmatprep.subr.mxu0 0.0
    %192 = vmatpush2.msra.mxu0 0.0
    %193 = vmatprep.subr.mxu0 0.0
    %194 = vmatpush2.msra.mxu0 0.0
    %195 = vmatprep.subr.mxu0 0.0
    %196 = vmatpush2.msra.mxu0 0.0
    %197 = vmatprep.subr.mxu0 0.0
    %198 = vmatpush2.msra.mxu0 0.0
    %199 = vmatprep.subr.mxu0 0.0
    %200 = vmatpush2.msra.mxu0 0.0
    %201 = vmatprep.subr.mxu0 0.0
    %202 = vmatpush2.msra.mxu0 0.0
    %203 = vmatprep.subr.mxu0 0.0
    %204 = vmatpush2.msra.mxu0 0.0
    %205 = vmatprep.subr.mxu0 0.0
    %206 = vmatpush2.msra.mxu0 0.0
    %207 = vmatprep.subr.mxu0 0.0
    %208 = vmatpush2.msra.mxu0 0.0
    %209 = vmatprep.subr.mxu0 0.0
    %210 = vmatpush2.msra.mxu0 0.0
    %211 = vmatprep.subr.mxu0 0.0
    %212 = vmatpush2.msra.mxu0 0.0
    %213 = vmatprep.mubr.f32.mxu0 0.0
    %214 = vmatmul.mubr.f32.gmra.mxu0 %v69
    %v215 = vpop.f32.mrf.mxu0
    %v216 = vadd.f32 0.0, %v215
    %v217 = vpop.f32.mrf.mxu0
    %218 = vmatprep.mubr.f32.mxu0 0.0
    %219 = vmatmul.mubr.f32.gmra.mxu0 %v72
    %v220 = vpop.f32.mrf.mxu0
    %v221 = vadd.f32 0.0, %v220
    %v222 = vpop.f32.mrf.mxu0
    %223 = vdwg.mxu0
    %224 = vmatprep.subr.mxu0 0.0
    %225 = vmatpush1.msra.mxu0 0.0
    %226 = vmatprep.subr.mxu0 0.0
    %227 = vmatpush1.msra.mxu0 0.0
    %228 = vmatprep.subr.mxu0 0.0
    %229 = vmatpush1.msra.mxu0 0.0
    %230 = vmatprep.subr.mxu0 0.0
    %231 = vmatpush1.msra.mxu0 0.0
    %232 = vmatprep.subr.mxu0 0.0
    %233 = vmatpush1.msra.mxu0 0.0
    %234 = vmatprep.subr.mxu0 0.0
    %235 = vmatpush1.msra.mxu0 0.0
    %236 = vmatprep.subr.mxu0 0.0
    %237 = vmatpush1.msra.mxu0 0.0
    %238 = vmatprep.subr.mxu0 0.0
    %239 = vmatpush1.msra.mxu0 0.0
    %240 = vmatprep.subr.mxu0 0.0
    %241 = vmatpush1.msra.mxu0 0.0
    %242 = vmatprep.subr.mxu0 0.0
    %243 = vmatpush1.msra.mxu0 0.0
    %244 = vmatprep.subr.mxu0 0.0
    %245 = vmatpush1.msra.mxu0 0.0
    %246 = vmatprep.subr.mxu0 0.0
    %247 = vmatpush1.msra.mxu0 0.0
    %248 = vmatprep.subr.mxu0 0.0
    %249 = vmatpush1.msra.mxu0 %v63
    %250 = vmatprep.subr.mxu0 0.0
    %251 = vmatpush1.msra.mxu0 %v62
    %252 = vmatprep.subr.mxu0 0.0
    %253 = vmatpush1.msra.mxu0 %v61
    %254 = vmatprep.subr.mxu0 0.0
    %255 = vmatpush1.msra.mxu0 %v60
    %256 = vmatprep.subr.mxu0 0.0
    %257 = vmatpush2.msra.mxu0 0.0
    %258 = vmatprep.subr.mxu0 0.0
    %259 = vmatpush2.msra.mxu0 0.0
    %260 = vmatprep.subr.mxu0 0.0
    %261 = vmatpush2.msra.mxu0 0.0
    %262 = vmatprep.subr.mxu0 0.0
    %263 = vmatpush2.msra.mxu0 0.0
    %264 = vmatprep.subr.mxu0 0.0
    %265 = vmatpush2.msra.mxu0 0.0
    %266 = vmatprep.subr.mxu0 0.0
    %267 = vmatpush2.msra.mxu0 0.0
    %268 = vmatprep.subr.mxu0 0.0
    %269 = vmatpush2.msra.mxu0 0.0
    %270 = vmatprep.subr.mxu0 0.0
    %271 = vmatpush2.msra.mxu0 0.0
    %272 = vmatprep.subr.mxu0 0.0
    %273 = vmatpush2.msra.mxu0 0.0
    %274 = vmatprep.subr.mxu0 0.0
    %275 = vmatpush2.msra.mxu0 0.0
    %276 = vmatprep.subr.mxu0 0.0
    %277 = vmatpush2.msra.mxu0 0.0
    %278 = vmatprep.subr.mxu0 0.0
    %279 = vmatpush2.msra.mxu0 0.0
    %280 = vmatprep.subr.mxu0 0.0
    %281 = vmatpush2.msra.mxu0 0.0
    %282 = vmatprep.subr.mxu0 0.0
    %283 = vmatpush2.msra.mxu0 0.0
    %284 = vmatprep.subr.mxu0 0.0
    %285 = vmatpush2.msra.mxu0 0.0
    %286 = vmatprep.subr.mxu0 0.0
    %287 = vmatpush2.msra.mxu0 0.0
    %288 = vmatprep.mubr.f32.mxu0 0.0
    %289 = vmatmul.mubr.f32.gmra.mxu0 %v69
    %v290 = vpop.f32.mrf.mxu0
    %v291 = vadd.f32 0.0, %v290
    %v292 = vpop.f32.mrf.mxu0
    %293 = vmatprep.mubr.f32.mxu0 0.0
    %294 = vmatmul.mubr.f32.gmra.mxu0 %v72
    %v295 = vpop.f32.mrf.mxu0
    %v296 = vadd.f32 0.0, %v295
    %v297 = vpop.f32.mrf.mxu0
    %298 = vdwg.mxu0
    %299 = vmatprep.subr.mxu0 0.0
    %300 = vmatpush1.msra.mxu0 0.0
    %301 = vmatprep.subr.mxu0 0.0
    %302 = vmatpush1.msra.mxu0 0.0
    %303 = vmatprep.subr.mxu0 0.0
    %304 = vmatpush1.msra.mxu0 0.0
    %305 = vmatprep.subr.mxu0 0.0
    %306 = vmatpush1.msra.mxu0 0.0
    %307 = vmatprep.subr.mxu0 0.0
    %308 = vmatpush1.msra.mxu0 0.0
    %309 = vmatprep.subr.mxu0 0.0
    %310 = vmatpush1.msra.mxu0 0.0
    %311 = vmatprep.subr.mxu0 0.0
    %312 = vmatpush1.msra.mxu0 0.0
    %313 = vmatprep.subr.mxu0 0.0
    %314 = vmatpush1.msra.mxu0 0.0
    %315 = vmatprep.subr.mxu0 0.0
    %316 = vmatpush1.msra.mxu0 0.0
    %317 = vmatprep.subr.mxu0 0.0
    %318 = vmatpush1.msra.mxu0 0.0
    %319 = vmatprep.subr.mxu0 0.0
    %320 = vmatpush1.msra.mxu0 0.0
    %321 = vmatprep.subr.mxu0 0.0
    %322 = vmatpush1.msra.mxu0 0.0
    %323 = vmatprep.subr.mxu0 0.0
    %324 = vmatpush1.msra.mxu0 %v67
    %325 = vmatprep.subr.mxu0 0.0
    %326 = vmatpush1.msra.mxu0 %v66
    %327 = vmatprep.subr.mxu0 0.0
    %328 = vmatpush1.msra.mxu0 %v65
    %329 = vmatprep.subr.mxu0 0.0
    %330 = vmatpush1.msra.mxu0 %v64
    %331 = vmatprep.subr.mxu0 0.0
    %332 = vmatpush2.msra.mxu0 0.0
    %333 = vmatprep.subr.mxu0 0.0
    %334 = vmatpush2.msra.mxu0 0.0
    %335 = vmatprep.subr.mxu0 0.0
    %336 = vmatpush2.msra.mxu0 0.0
    %337 = vmatprep.subr.mxu0 0.0
    %338 = vmatpush2.msra.mxu0 0.0
    %339 = vmatprep.subr.mxu0 0.0
    %340 = vmatpush2.msra.mxu0 0.0
    %341 = vmatprep.subr.mxu0 0.0
    %342 = vmatpush2.msra.mxu0 0.0
    %343 = vmatprep.subr.mxu0 0.0
    %344 = vmatpush2.msra.mxu0 0.0
    %345 = vmatprep.subr.mxu0 0.0
    %346 = vmatpush2.msra.mxu0 0.0
    %347 = vmatprep.subr.mxu0 0.0
    %348 = vmatpush2.msra.mxu0 0.0
    %349 = vmatprep.subr.mxu0 0.0
    %350 = vmatpush2.msra.mxu0 0.0
    %351 = vmatprep.subr.mxu0 0.0
    %352 = vmatpush2.msra.mxu0 0.0
    %353 = vmatprep.subr.mxu0 0.0
    %354 = vmatpush2.msra.mxu0 0.0
    %355 = vmatprep.subr.mxu0 0.0
    %356 = vmatpush2.msra.mxu0 0.0
    %357 = vmatprep.subr.mxu0 0.0
    %358 = vmatpush2.msra.mxu0 0.0
    %359 = vmatprep.subr.mxu0 0.0
    %360 = vmatpush2.msra.mxu0 0.0
    %361 = vmatprep.subr.mxu0 0.0
    %362 = vmatpush2.msra.mxu0 0.0
    %363 = vmatprep.mubr.f32.mxu0 0.0
    %364 = vmatmul.mubr.f32.gmra.mxu0 %v69
    %v365 = vpop.f32.mrf.mxu0
    %v366 = vadd.f32 0.0, %v365
    %v367 = vpop.f32.mrf.mxu0
    %368 = vmatprep.mubr.f32.mxu0 0.0
    %369 = vmatmul.mubr.f32.gmra.mxu0 %v72
    %v370 = vpop.f32.mrf.mxu0
    %v371 = vadd.f32 0.0, %v370
    %v372 = vpop.f32.mrf.mxu0
    %373 = vdwg.mxu0
    %v374 = vld [vmem:[%s3] sm:$0xff]
    %v375 = vld [vmem:[%s3 + $0x8] sm:$0xff]
    %v376 = vld [vmem:[%s3 + $0x10] sm:$0xff]
    %v377 = vld [vmem:[%s3 + $0x18] sm:$0xff]
    %v378 = vld [vmem:[%s3 + $0x20] sm:$0xff]
    %v379 = vld [vmem:[%s3 + $0x28] sm:$0xff]
    %v380 = vld [vmem:[%s3 + $0x30] sm:$0xff]
    %v381 = vld [vmem:[%s3 + $0x38] sm:$0xff]
    %v382 = vld [vmem:[%s3 + $0x40] sm:$0xff]
    %v383 = vld [vmem:[%s3 + $0x48] sm:$0xff]
    %v384 = vld [vmem:[%s3 + $0x50] sm:$0xff]
    %v385 = vld [vmem:[%s3 + $0x58] sm:$0xff]
    %v386 = vld [vmem:[%s3 + $0x60] sm:$0xff]
    %v387 = vld [vmem:[%s3 + $0x68] sm:$0xff]
    %v388 = vld [vmem:[%s3 + $0x70] sm:$0xff]
    %v389 = vld [vmem:[%s3 + $0x78] sm:$0xff]
    %390 = vmatprep.subr.mxu0 0.0
    %391 = vmatpush1.msra.mxu0 0.0
    %392 = vmatprep.subr.mxu0 0.0
    %393 = vmatpush1.msra.mxu0 0.0
    %394 = vmatprep.subr.mxu0 0.0
    %395 = vmatpush1.msra.mxu0 0.0
    %396 = vmatprep.subr.mxu0 0.0
    %397 = vmatpush1.msra.mxu0 0.0
    %398 = vmatprep.subr.mxu0 0.0
    %399 = vmatpush1.msra.mxu0 0.0
    %400 = vmatprep.subr.mxu0 0.0
    %401 = vmatpush1.msra.mxu0 0.0
    %402 = vmatprep.subr.mxu0 0.0
    %403 = vmatpush1.msra.mxu0 0.0
    %404 = vmatprep.subr.mxu0 0.0
    %405 = vmatpush1.msra.mxu0 0.0
    %406 = vmatprep.subr.mxu0 0.0
    %407 = vmatpush1.msra.mxu0 0.0
    %408 = vmatprep.subr.mxu0 0.0
    %409 = vmatpush1.msra.mxu0 0.0
    %410 = vmatprep.subr.mxu0 0.0
    %411 = vmatpush1.msra.mxu0 0.0
    %412 = vmatprep.subr.mxu0 0.0
    %413 = vmatpush1.msra.mxu0 0.0
    %414 = vmatprep.subr.mxu0 0.0
    %415 = vmatpush1.msra.mxu0 %v377
    %416 = vmatprep.subr.mxu0 0.0
    %417 = vmatpush1.msra.mxu0 %v376
    %418 = vmatprep.subr.mxu0 0.0
    %419 = vmatpush1.msra.mxu0 %v375
    %420 = vmatprep.subr.mxu0 0.0
    %421 = vmatpush1.msra.mxu0 %v374
    %422 = vmatprep.subr.mxu0 0.0
    %423 = vmatpush2.msra.mxu0 0.0
    %424 = vmatprep.subr.mxu0 0.0
    %425 = vmatpush2.msra.mxu0 0.0
    %426 = vmatprep.subr.mxu0 0.0
    %427 = vmatpush2.msra.mxu0 0.0
    %428 = vmatprep.subr.mxu0 0.0
    %429 = vmatpush2.msra.mxu0 0.0
    %430 = vmatprep.subr.mxu0 0.0
    %431 = vmatpush2.msra.mxu0 0.0
    %432 = vmatprep.subr.mxu0 0.0
    %433 = vmatpush2.msra.mxu0 0.0
    %434 = vmatprep.subr.mxu0 0.0
    %435 = vmatpush2.msra.mxu0 0.0
    %436 = vmatprep.subr.mxu0 0.0
    %437 = vmatpush2.msra.mxu0 0.0
    %438 = vmatprep.subr.mxu0 0.0
    %439 = vmatpush2.msra.mxu0 0.0
    %440 = vmatprep.subr.mxu0 0.0
    %441 = vmatpush2.msra.mxu0 0.0
    %442 = vmatprep.subr.mxu0 0.0
    %443 = vmatpush2.msra.mxu0 0.0
    %444 = vmatprep.subr.mxu0 0.0
    %445 = vmatpush2.msra.mxu0 0.0
    %446 = vmatprep.subr.mxu0 0.0
    %447 = vmatpush2.msra.mxu0 0.0
    %448 = vmatprep.subr.mxu0 0.0
    %449 = vmatpush2.msra.mxu0 0.0
    %450 = vmatprep.subr.mxu0 0.0
    %451 = vmatpush2.msra.mxu0 0.0
    %452 = vmatprep.subr.mxu0 0.0
    %453 = vmatpush2.msra.mxu0 0.0
    %454 = vmatprep.mubr.f32.mxu0 0.0
    %455 = vmatmul.mubr.f32.gmra.mxu0 %v69
    %v456 = vpop.f32.mrf.mxu0
    %v457 = vadd.f32 0.0, %v456
    %v458 = vpop.f32.mrf.mxu0
    %459 = vmatprep.mubr.f32.mxu0 0.0
    %460 = vmatmul.mubr.f32.gmra.mxu0 %v72
    %v461 = vpop.f32.mrf.mxu0
    %v462 = vadd.f32 0.0, %v461
    %v463 = vpop.f32.mrf.mxu0
    %464 = vdwg.mxu0
    %465 = vmatprep.subr.mxu0 0.0
    %466 = vmatpush1.msra.mxu0 0.0
    %467 = vmatprep.subr.mxu0 0.0
    %468 = vmatpush1.msra.mxu0 0.0
    %469 = vmatprep.subr.mxu0 0.0
    %470 = vmatpush1.msra.mxu0 0.0
    %471 = vmatprep.subr.mxu0 0.0
    %472 = vmatpush1.msra.mxu0 0.0
    %473 = vmatprep.subr.mxu0 0.0
    %474 = vmatpush1.msra.mxu0 0.0
    %475 = vmatprep.subr.mxu0 0.0
    %476 = vmatpush1.msra.mxu0 0.0
    %477 = vmatprep.subr.mxu0 0.0
    %478 = vmatpush1.msra.mxu0 0.0
    %479 = vmatprep.subr.mxu0 0.0
    %480 = vmatpush1.msra.mxu0 0.0
    %481 = vmatprep.subr.mxu0 0.0
    %482 = vmatpush1.msra.mxu0 0.0
    %483 = vmatprep.subr.mxu0 0.0
    %484 = vmatpush1.msra.mxu0 0.0
    %485 = vmatprep.subr.mxu0 0.0
    %486 = vmatpush1.msra.mxu0 0.0
    %487 = vmatprep.subr.mxu0 0.0
    %488 = vmatpush1.msra.mxu0 0.0
    %489 = vmatprep.subr.mxu0 0.0
    %490 = vmatpush1.msra.mxu0 %v381
    %491 = vmatprep.subr.mxu0 0.0
    %492 = vmatpush1.msra.mxu0 %v380
    %493 = vmatprep.subr.mxu0 0.0
    %494 = vmatpush1.msra.mxu0 %v379
    %495 = vmatprep.subr.mxu0 0.0
    %496 = vmatpush1.msra.mxu0 %v378
    %497 = vmatprep.subr.mxu0 0.0
    %498 = vmatpush2.msra.mxu0 0.0
    %499 = vmatprep.subr.mxu0 0.0
    %500 = vmatpush2.msra.mxu0 0.0
    %501 = vmatprep.subr.mxu0 0.0
    %502 = vmatpush2.msra.mxu0 0.0
    %503 = vmatprep.subr.mxu0 0.0
    %504 = vmatpush2.msra.mxu0 0.0
    %505 = vmatprep.subr.mxu0 0.0
    %506 = vmatpush2.msra.mxu0 0.0
    %507 = vmatprep.subr.mxu0 0.0
    %508 = vmatpush2.msra.mxu0 0.0
    %509 = vmatprep.subr.mxu0 0.0
    %510 = vmatpush2.msra.mxu0 0.0
    %511 = vmatprep.subr.mxu0 0.0
    %512 = vmatpush2.msra.mxu0 0.0
    %513 = vmatprep.subr.mxu0 0.0
    %514 = vmatpush2.msra.mxu0 0.0
    %515 = vmatprep.subr.mxu0 0.0
    %516 = vmatpush2.msra.mxu0 0.0
    %517 = vmatprep.subr.mxu0 0.0
    %518 = vmatpush2.msra.mxu0 0.0
    %519 = vmatprep.subr.mxu0 0.0
    %520 = vmatpush2.msra.mxu0 0.0
    %521 = vmatprep.subr.mxu0 0.0
    %522 = vmatpush2.msra.mxu0 0.0
    %523 = vmatprep.subr.mxu0 0.0
    %524 = vmatpush2.msra.mxu0 0.0
    %525 = vmatprep.subr.mxu0 0.0
    %526 = vmatpush2.msra.mxu0 0.0
    %527 = vmatprep.subr.mxu0 0.0
    %528 = vmatpush2.msra.mxu0 0.0
    %529 = vmatprep.mubr.f32.mxu0 0.0
    %530 = vmatmul.mubr.f32.gmra.mxu0 %v69
    %v531 = vpop.f32.mrf.mxu0
    %v532 = vadd.f32 0.0, %v531
    %v533 = vpop.f32.mrf.mxu0
    %534 = vmatprep.mubr.f32.mxu0 0.0
    %535 = vmatmul.mubr.f32.gmra.mxu0 %v72
    %v536 = vpop.f32.mrf.mxu0
    %v537 = vadd.f32 0.0, %v536
    %v538 = vpop.f32.mrf.mxu0
    %539 = vdwg.mxu0
    %540 = vmatprep.subr.mxu0 0.0
    %541 = vmatpush1.msra.mxu0 0.0
    %542 = vmatprep.subr.mxu0 0.0
    %543 = vmatpush1.msra.mxu0 0.0
    %544 = vmatprep.subr.mxu0 0.0
    %545 = vmatpush1.msra.mxu0 0.0
    %546 = vmatprep.subr.mxu0 0.0
    %547 = vmatpush1.msra.mxu0 0.0
    %548 = vmatprep.subr.mxu0 0.0
    %549 = vmatpush1.msra.mxu0 0.0
    %550 = vmatprep.subr.mxu0 0.0
    %551 = vmatpush1.msra.mxu0 0.0
    %552 = vmatprep.subr.mxu0 0.0
    %553 = vmatpush1.msra.mxu0 0.0
    %554 = vmatprep.subr.mxu0 0.0
    %555 = vmatpush1.msra.mxu0 0.0
    %556 = vmatprep.subr.mxu0 0.0
    %557 = vmatpush1.msra.mxu0 0.0
    %558 = vmatprep.subr.mxu0 0.0
    %559 = vmatpush1.msra.mxu0 0.0
    %560 = vmatprep.subr.mxu0 0.0
    %561 = vmatpush1.msra.mxu0 0.0
    %562 = vmatprep.subr.mxu0 0.0
    %563 = vmatpush1.msra.mxu0 0.0
    %564 = vmatprep.subr.mxu0 0.0
    %565 = vmatpush1.msra.mxu0 %v385
    %566 = vmatprep.subr.mxu0 0.0
    %567 = vmatpush1.msra.mxu0 %v384
    %568 = vmatprep.subr.mxu0 0.0
    %569 = vmatpush1.msra.mxu0 %v383
    %570 = vmatprep.subr.mxu0 0.0
    %571 = vmatpush1.msra.mxu0 %v382
    %572 = vmatprep.subr.mxu0 0.0
    %573 = vmatpush2.msra.mxu0 0.0
    %574 = vmatprep.subr.mxu0 0.0
    %575 = vmatpush2.msra.mxu0 0.0
    %576 = vmatprep.subr.mxu0 0.0
    %577 = vmatpush2.msra.mxu0 0.0
    %578 = vmatprep.subr.mxu0 0.0
    %579 = vmatpush2.msra.mxu0 0.0
    %580 = vmatprep.subr.mxu0 0.0
    %581 = vmatpush2.msra.mxu0 0.0
    %582 = vmatprep.subr.mxu0 0.0
    %583 = vmatpush2.msra.mxu0 0.0
    %584 = vmatprep.subr.mxu0 0.0
    %585 = vmatpush2.msra.mxu0 0.0
    %586 = vmatprep.subr.mxu0 0.0
    %587 = vmatpush2.msra.mxu0 0.0
    %588 = vmatprep.subr.mxu0 0.0
    %589 = vmatpush2.msra.mxu0 0.0
    %590 = vmatprep.subr.mxu0 0.0
    %591 = vmatpush2.msra.mxu0 0.0
    %592 = vmatprep.subr.mxu0 0.0
    %593 = vmatpush2.msra.mxu0 0.0
    %594 = vmatprep.subr.mxu0 0.0
    %595 = vmatpush2.msra.mxu0 0.0
    %596 = vmatprep.subr.mxu0 0.0
    %597 = vmatpush2.msra.mxu0 0.0
    %598 = vmatprep.subr.mxu0 0.0
    %599 = vmatpush2.msra.mxu0 0.0
    %600 = vmatprep.subr.mxu0 0.0
    %601 = vmatpush2.msra.mxu0 0.0
    %602 = vmatprep.subr.mxu0 0.0
    %603 = vmatpush2.msra.mxu0 0.0
    %604 = vmatprep.mubr.f32.mxu0 0.0
    %605 = vmatmul.mubr.f32.gmra.mxu0 %v69
    %v606 = vpop.f32.mrf.mxu0
    %v607 = vadd.f32 0.0, %v606
    %v608 = vpop.f32.mrf.mxu0
    %609 = vmatprep.mubr.f32.mxu0 0.0
    %610 = vmatmul.mubr.f32.gmra.mxu0 %v72
    %v611 = vpop.f32.mrf.mxu0
    %v612 = vadd.f32 0.0, %v611
    %v613 = vpop.f32.mrf.mxu0
    %614 = vdwg.mxu0
    %615 = vmatprep.subr.mxu0 0.0
    %616 = vmatpush1.msra.mxu0 0.0
    %617 = vmatprep.subr.mxu0 0.0
    %618 = vmatpush1.msra.mxu0 0.0
    %619 = vmatprep.subr.mxu0 0.0
    %620 = vmatpush1.msra.mxu0 0.0
    %621 = vmatprep.subr.mxu0 0.0
    %622 = vmatpush1.msra.mxu0 0.0
    %623 = vmatprep.subr.mxu0 0.0
    %624 = vmatpush1.msra.mxu0 0.0
    %625 = vmatprep.subr.mxu0 0.0
    %626 = vmatpush1.msra.mxu0 0.0
    %627 = vmatprep.subr.mxu0 0.0
    %628 = vmatpush1.msra.mxu0 0.0
    %629 = vmatprep.subr.mxu0 0.0
    %630 = vmatpush1.msra.mxu0 0.0
    %631 = vmatprep.subr.mxu0 0.0
    %632 = vmatpush1.msra.mxu0 0.0
    %633 = vmatprep.subr.mxu0 0.0
    %634 = vmatpush1.msra.mxu0 0.0
    %635 = vmatprep.subr.mxu0 0.0
    %636 = vmatpush1.msra.mxu0 0.0
    %637 = vmatprep.subr.mxu0 0.0
    %638 = vmatpush1.msra.mxu0 0.0
    %639 = vmatprep.subr.mxu0 0.0
    %640 = vmatpush1.msra.mxu0 %v389
    %641 = vmatprep.subr.mxu0 0.0
    %642 = vmatpush1.msra.mxu0 %v388
    %643 = vmatprep.subr.mxu0 0.0
    %644 = vmatpush1.msra.mxu0 %v387
    %645 = vmatprep.subr.mxu0 0.0
    %646 = vmatpush1.msra.mxu0 %v386
    %647 = vmatprep.subr.mxu0 0.0
    %648 = vmatpush2.msra.mxu0 0.0
    %649 = vmatprep.subr.mxu0 0.0
    %650 = vmatpush2.msra.mxu0 0.0
    %651 = vmatprep.subr.mxu0 0.0
    %652 = vmatpush2.msra.mxu0 0.0
    %653 = vmatprep.subr.mxu0 0.0
    %654 = vmatpush2.msra.mxu0 0.0
    %655 = vmatprep.subr.mxu0 0.0
    %656 = vmatpush2.msra.mxu0 0.0
    %657 = vmatprep.subr.mxu0 0.0
    %658 = vmatpush2.msra.mxu0 0.0
    %659 = vmatprep.subr.mxu0 0.0
    %660 = vmatpush2.msra.mxu0 0.0
    %661 = vmatprep.subr.mxu0 0.0
    %662 = vmatpush2.msra.mxu0 0.0
    %663 = vmatprep.subr.mxu0 0.0
    %664 = vmatpush2.msra.mxu0 0.0
    %665 = vmatprep.subr.mxu0 0.0
    %666 = vmatpush2.msra.mxu0 0.0
    %667 = vmatprep.subr.mxu0 0.0
    %668 = vmatpush2.msra.mxu0 0.0
    %669 = vmatprep.subr.mxu0 0.0
    %670 = vmatpush2.msra.mxu0 0.0
    %671 = vmatprep.subr.mxu0 0.0
    %672 = vmatpush2.msra.mxu0 0.0
    %673 = vmatprep.subr.mxu0 0.0
    %674 = vmatpush2.msra.mxu0 0.0
    %675 = vmatprep.subr.mxu0 0.0
    %676 = vmatpush2.msra.mxu0 0.0
    %677 = vmatprep.subr.mxu0 0.0
    %678 = vmatpush2.msra.mxu0 0.0
    %679 = vmatprep.mubr.f32.mxu0 0.0
    %680 = vmatmul.mubr.f32.gmra.mxu0 %v69
    %v681 = vpop.f32.mrf.mxu0
    %v682 = vadd.f32 0.0, %v681
    %v683 = vpop.f32.mrf.mxu0
    %684 = vmatprep.mubr.f32.mxu0 0.0
    %685 = vmatmul.mubr.f32.gmra.mxu0 %v72
    %v686 = vpop.f32.mrf.mxu0
    %v687 = vadd.f32 0.0, %v686
    %v688 = vpop.f32.mrf.mxu0
    %689 = vdwg.mxu0
    %v690 = vld [vmem:[%s4] sm:$0xff]
    %v691 = vld [vmem:[%s4 + $0x8] sm:$0xff]
    %v692 = vld [vmem:[%s4 + $0x10] sm:$0xff]
    %v693 = vld [vmem:[%s4 + $0x18] sm:$0xff]
    %v694 = vld [vmem:[%s4 + $0x20] sm:$0xff]
    %v695 = vld [vmem:[%s4 + $0x28] sm:$0xff]
    %v696 = vld [vmem:[%s4 + $0x30] sm:$0xff]
    %v697 = vld [vmem:[%s4 + $0x38] sm:$0xff]
    %v698 = vld [vmem:[%s4 + $0x40] sm:$0xff]
    %v699 = vld [vmem:[%s4 + $0x48] sm:$0xff]
    %v700 = vld [vmem:[%s4 + $0x50] sm:$0xff]
    %v701 = vld [vmem:[%s4 + $0x58] sm:$0xff]
    %v702 = vld [vmem:[%s4 + $0x60] sm:$0xff]
    %v703 = vld [vmem:[%s4 + $0x68] sm:$0xff]
    %v704 = vld [vmem:[%s4 + $0x70] sm:$0xff]
    %v705 = vld [vmem:[%s4 + $0x78] sm:$0xff]
    %706 = vmatprep.subr.mxu0 0.0
    %707 = vmatpush1.msra.mxu0 0.0
    %708 = vmatprep.subr.mxu0 0.0
    %709 = vmatpush1.msra.mxu0 0.0
    %710 = vmatprep.subr.mxu0 0.0
    %711 = vmatpush1.msra.mxu0 0.0
    %712 = vmatprep.subr.mxu0 0.0
    %713 = vmatpush1.msra.mxu0 0.0
    %714 = vmatprep.subr.mxu0 0.0
    %715 = vmatpush1.msra.mxu0 0.0
    %716 = vmatprep.subr.mxu0 0.0
    %717 = vmatpush1.msra.mxu0 0.0
    %718 = vmatprep.subr.mxu0 0.0
    %719 = vmatpush1.msra.mxu0 0.0
    %720 = vmatprep.subr.mxu0 0.0
    %721 = vmatpush1.msra.mxu0 0.0
    %722 = vmatprep.subr.mxu0 0.0
    %723 = vmatpush1.msra.mxu0 0.0
    %724 = vmatprep.subr.mxu0 0.0
    %725 = vmatpush1.msra.mxu0 0.0
    %726 = vmatprep.subr.mxu0 0.0
    %727 = vmatpush1.msra.mxu0 0.0
    %728 = vmatprep.subr.mxu0 0.0
    %729 = vmatpush1.msra.mxu0 0.0
    %730 = vmatprep.subr.mxu0 0.0
    %731 = vmatpush1.msra.mxu0 %v693
    %732 = vmatprep.subr.mxu0 0.0
    %733 = vmatpush1.msra.mxu0 %v692
    %734 = vmatprep.subr.mxu0 0.0
    %735 = vmatpush1.msra.mxu0 %v691
    %736 = vmatprep.subr.mxu0 0.0
    %737 = vmatpush1.msra.mxu0 %v690
    %738 = vmatprep.subr.mxu0 0.0
    %739 = vmatpush2.msra.mxu0 0.0
    %740 = vmatprep.subr.mxu0 0.0
    %741 = vmatpush2.msra.mxu0 0.0
    %742 = vmatprep.subr.mxu0 0.0
    %743 = vmatpush2.msra.mxu0 0.0
    %744 = vmatprep.subr.mxu0 0.0
    %745 = vmatpush2.msra.mxu0 0.0
    %746 = vmatprep.subr.mxu0 0.0
    %747 = vmatpush2.msra.mxu0 0.0
    %748 = vmatprep.subr.mxu0 0.0
    %749 = vmatpush2.msra.mxu0 0.0
    %750 = vmatprep.subr.mxu0 0.0
    %751 = vmatpush2.msra.mxu0 0.0
    %752 = vmatprep.subr.mxu0 0.0
    %753 = vmatpush2.msra.mxu0 0.0
    %754 = vmatprep.subr.mxu0 0.0
    %755 = vmatpush2.msra.mxu0 0.0
    %756 = vmatprep.subr.mxu0 0.0
    %757 = vmatpush2.msra.mxu0 0.0
    %758 = vmatprep.subr.mxu0 0.0
    %759 = vmatpush2.msra.mxu0 0.0
    %760 = vmatprep.subr.mxu0 0.0
    %761 = vmatpush2.msra.mxu0 0.0
    %762 = vmatprep.subr.mxu0 0.0
    %763 = vmatpush2.msra.mxu0 0.0
    %764 = vmatprep.subr.mxu0 0.0
    %765 = vmatpush2.msra.mxu0 0.0
    %766 = vmatprep.subr.mxu0 0.0
    %767 = vmatpush2.msra.mxu0 0.0
    %768 = vmatprep.subr.mxu0 0.0
    %769 = vmatpush2.msra.mxu0 0.0
    %770 = vmatprep.mubr.f32.mxu0 0.0
    %771 = vmatmul.mubr.f32.gmra.mxu0 %v69
    %v772 = vpop.f32.mrf.mxu0
    %v773 = vadd.f32 0.0, %v772
    %v774 = vpop.f32.mrf.mxu0
    %775 = vmatprep.mubr.f32.mxu0 0.0
    %776 = vmatmul.mubr.f32.gmra.mxu0 %v72
    %v777 = vpop.f32.mrf.mxu0
    %v778 = vadd.f32 0.0, %v777
    %v779 = vpop.f32.mrf.mxu0
    %780 = vdwg.mxu0
    %781 = vmatprep.subr.mxu0 0.0
    %782 = vmatpush1.msra.mxu0 0.0
    %783 = vmatprep.subr.mxu0 0.0
    %784 = vmatpush1.msra.mxu0 0.0
    %785 = vmatprep.subr.mxu0 0.0
    %786 = vmatpush1.msra.mxu0 0.0
    %787 = vmatprep.subr.mxu0 0.0
    %788 = vmatpush1.msra.mxu0 0.0
    %789 = vmatprep.subr.mxu0 0.0
    %790 = vmatpush1.msra.mxu0 0.0
    %791 = vmatprep.subr.mxu0 0.0
    %792 = vmatpush1.msra.mxu0 0.0
    %793 = vmatprep.subr.mxu0 0.0
    %794 = vmatpush1.msra.mxu0 0.0
    %795 = vmatprep.subr.mxu0 0.0
    %796 = vmatpush1.msra.mxu0 0.0
    %797 = vmatprep.subr.mxu0 0.0
    %798 = vmatpush1.msra.mxu0 0.0
    %799 = vmatprep.subr.mxu0 0.0
    %800 = vmatpush1.msra.mxu0 0.0
    %801 = vmatprep.subr.mxu0 0.0
    %802 = vmatpush1.msra.mxu0 0.0
    %803 = vmatprep.subr.mxu0 0.0
    %804 = vmatpush1.msra.mxu0 0.0
    %805 = vmatprep.subr.mxu0 0.0
    %806 = vmatpush1.msra.mxu0 %v697
    %807 = vmatprep.subr.mxu0 0.0
    %808 = vmatpush1.msra.mxu0 %v696
    %809 = vmatprep.subr.mxu0 0.0
    %810 = vmatpush1.msra.mxu0 %v695
    %811 = vmatprep.subr.mxu0 0.0
    %812 = vmatpush1.msra.mxu0 %v694
    %813 = vmatprep.subr.mxu0 0.0
    %814 = vmatpush2.msra.mxu0 0.0
    %815 = vmatprep.subr.mxu0 0.0
    %816 = vmatpush2.msra.mxu0 0.0
    %817 = vmatprep.subr.mxu0 0.0
    %818 = vmatpush2.msra.mxu0 0.0
    %819 = vmatprep.subr.mxu0 0.0
    %820 = vmatpush2.msra.mxu0 0.0
    %821 = vmatprep.subr.mxu0 0.0
    %822 = vmatpush2.msra.mxu0 0.0
    %823 = vmatprep.subr.mxu0 0.0
    %824 = vmatpush2.msra.mxu0 0.0
    %825 = vmatprep.subr.mxu0 0.0
    %826 = vmatpush2.msra.mxu0 0.0
    %827 = vmatprep.subr.mxu0 0.0
    %828 = vmatpush2.msra.mxu0 0.0
    %829 = vmatprep.subr.mxu0 0.0
    %830 = vmatpush2.msra.mxu0 0.0
    %831 = vmatprep.subr.mxu0 0.0
    %832 = vmatpush2.msra.mxu0 0.0
    %833 = vmatprep.subr.mxu0 0.0
    %834 = vmatpush2.msra.mxu0 0.0
    %835 = vmatprep.subr.mxu0 0.0
    %836 = vmatpush2.msra.mxu0 0.0
    %837 = vmatprep.subr.mxu0 0.0
    %838 = vmatpush2.msra.mxu0 0.0
    %839 = vmatprep.subr.mxu0 0.0
    %840 = vmatpush2.msra.mxu0 0.0
    %841 = vmatprep.subr.mxu0 0.0
    %842 = vmatpush2.msra.mxu0 0.0
    %843 = vmatprep.subr.mxu0 0.0
    %844 = vmatpush2.msra.mxu0 0.0
    %845 = vmatprep.mubr.f32.mxu0 0.0
    %846 = vmatmul.mubr.f32.gmra.mxu0 %v69
    %v847 = vpop.f32.mrf.mxu0
    %v848 = vadd.f32 0.0, %v847
    %v849 = vpop.f32.mrf.mxu0
    %850 = vmatprep.mubr.f32.mxu0 0.0
    %851 = vmatmul.mubr.f32.gmra.mxu0 %v72
    %v852 = vpop.f32.mrf.mxu0
    %v853 = vadd.f32 0.0, %v852
    %v854 = vpop.f32.mrf.mxu0
    %855 = vdwg.mxu0
    %856 = vmatprep.subr.mxu0 0.0
    %857 = vmatpush1.msra.mxu0 0.0
    %858 = vmatprep.subr.mxu0 0.0
    %859 = vmatpush1.msra.mxu0 0.0
    %860 = vmatprep.subr.mxu0 0.0
    %861 = vmatpush1.msra.mxu0 0.0
    %862 = vmatprep.subr.mxu0 0.0
    %863 = vmatpush1.msra.mxu0 0.0
    %864 = vmatprep.subr.mxu0 0.0
    %865 = vmatpush1.msra.mxu0 0.0
    %866 = vmatprep.subr.mxu0 0.0
    %867 = vmatpush1.msra.mxu0 0.0
    %868 = vmatprep.subr.mxu0 0.0
    %869 = vmatpush1.msra.mxu0 0.0
    %870 = vmatprep.subr.mxu0 0.0
    %871 = vmatpush1.msra.mxu0 0.0
    %872 = vmatprep.subr.mxu0 0.0
    %873 = vmatpush1.msra.mxu0 0.0
    %874 = vmatprep.subr.mxu0 0.0
    %875 = vmatpush1.msra.mxu0 0.0
    %876 = vmatprep.subr.mxu0 0.0
    %877 = vmatpush1.msra.mxu0 0.0
    %878 = vmatprep.subr.mxu0 0.0
    %879 = vmatpush1.msra.mxu0 0.0
    %880 = vmatprep.subr.mxu0 0.0
    %881 = vmatpush1.msra.mxu0 %v701
    %882 = vmatprep.subr.mxu0 0.0
    %883 = vmatpush1.msra.mxu0 %v700
    %884 = vmatprep.subr.mxu0 0.0
    %885 = vmatpush1.msra.mxu0 %v699
    %886 = vmatprep.subr.mxu0 0.0
    %887 = vmatpush1.msra.mxu0 %v698
    %888 = vmatprep.subr.mxu0 0.0
    %889 = vmatpush2.msra.mxu0 0.0
    %890 = vmatprep.subr.mxu0 0.0
    %891 = vmatpush2.msra.mxu0 0.0
    %892 = vmatprep.subr.mxu0 0.0
    %893 = vmatpush2.msra.mxu0 0.0
    %894 = vmatprep.subr.mxu0 0.0
    %895 = vmatpush2.msra.mxu0 0.0
    %896 = vmatprep.subr.mxu0 0.0
    %897 = vmatpush2.msra.mxu0 0.0
    %898 = vmatprep.subr.mxu0 0.0
    %899 = vmatpush2.msra.mxu0 0.0
    %900 = vmatprep.subr.mxu0 0.0
    %901 = vmatpush2.msra.mxu0 0.0
    %902 = vmatprep.subr.mxu0 0.0
    %903 = vmatpush2.msra.mxu0 0.0
    %904 = vmatprep.subr.mxu0 0.0
    %905 = vmatpush2.msra.mxu0 0.0
    %906 = vmatprep.subr.mxu0 0.0
    %907 = vmatpush2.msra.mxu0 0.0
    %908 = vmatprep.subr.mxu0 0.0
    %909 = vmatpush2.msra.mxu0 0.0
    %910 = vmatprep.subr.mxu0 0.0
    %911 = vmatpush2.msra.mxu0 0.0
    %912 = vmatprep.subr.mxu0 0.0
    %913 = vmatpush2.msra.mxu0 0.0
    %914 = vmatprep.subr.mxu0 0.0
    %915 = vmatpush2.msra.mxu0 0.0
    %916 = vmatprep.subr.mxu0 0.0
    %917 = vmatpush2.msra.mxu0 0.0
    %918 = vmatprep.subr.mxu0 0.0
    %919 = vmatpush2.msra.mxu0 0.0
    %920 = vmatprep.mubr.f32.mxu0 0.0
    %921 = vmatmul.mubr.f32.gmra.mxu0 %v69
    %v922 = vpop.f32.mrf.mxu0
    %v923 = vadd.f32 0.0, %v922
    %v924 = vpop.f32.mrf.mxu0
    %925 = vmatprep.mubr.f32.mxu0 0.0
    %926 = vmatmul.mubr.f32.gmra.mxu0 %v72
    %v927 = vpop.f32.mrf.mxu0
    %v928 = vadd.f32 0.0, %v927
    %v929 = vpop.f32.mrf.mxu0
    %930 = vdwg.mxu0
    %931 = vmatprep.subr.mxu0 0.0
    %932 = vmatpush1.msra.mxu0 0.0
    %933 = vmatprep.subr.mxu0 0.0
    %934 = vmatpush1.msra.mxu0 0.0
    %935 = vmatprep.subr.mxu0 0.0
    %936 = vmatpush1.msra.mxu0 0.0
    %937 = vmatprep.subr.mxu0 0.0
    %938 = vmatpush1.msra.mxu0 0.0
    %939 = vmatprep.subr.mxu0 0.0
    %940 = vmatpush1.msra.mxu0 0.0
    %941 = vmatprep.subr.mxu0 0.0
    %942 = vmatpush1.msra.mxu0 0.0
    %943 = vmatprep.subr.mxu0 0.0
    %944 = vmatpush1.msra.mxu0 0.0
    %945 = vmatprep.subr.mxu0 0.0
    %946 = vmatpush1.msra.mxu0 0.0
    %947 = vmatprep.subr.mxu0 0.0
    %948 = vmatpush1.msra.mxu0 0.0
    %949 = vmatprep.subr.mxu0 0.0
    %950 = vmatpush1.msra.mxu0 0.0
    %951 = vmatprep.subr.mxu0 0.0
    %952 = vmatpush1.msra.mxu0 0.0
    %953 = vmatprep.subr.mxu0 0.0
    %954 = vmatpush1.msra.mxu0 0.0
    %955 = vmatprep.subr.mxu0 0.0
    %956 = vmatpush1.msra.mxu0 %v705
    %957 = vmatprep.subr.mxu0 0.0
    %958 = vmatpush1.msra.mxu0 %v704
    %959 = vmatprep.subr.mxu0 0.0
    %960 = vmatpush1.msra.mxu0 %v703
    %961 = vmatprep.subr.mxu0 0.0
    %962 = vmatpush1.msra.mxu0 %v702
    %963 = vmatprep.subr.mxu0 0.0
    %964 = vmatpush2.msra.mxu0 0.0
    %965 = vmatprep.subr.mxu0 0.0
    %966 = vmatpush2.msra.mxu0 0.0
    %967 = vmatprep.subr.mxu0 0.0
    %968 = vmatpush2.msra.mxu0 0.0
    %969 = vmatprep.subr.mxu0 0.0
    %970 = vmatpush2.msra.mxu0 0.0
    %971 = vmatprep.subr.mxu0 0.0
    %972 = vmatpush2.msra.mxu0 0.0
    %973 = vmatprep.subr.mxu0 0.0
    %974 = vmatpush2.msra.mxu0 0.0
    %975 = vmatprep.subr.mxu0 0.0
    %976 = vmatpush2.msra.mxu0 0.0
    %977 = vmatprep.subr.mxu0 0.0
    %978 = vmatpush2.msra.mxu0 0.0
    %979 = vmatprep.subr.mxu0 0.0
    %980 = vmatpush2.msra.mxu0 0.0
    %981 = vmatprep.subr.mxu0 0.0
    %982 = vmatpush2.msra.mxu0 0.0
    %983 = vmatprep.subr.mxu0 0.0
    %984 = vmatpush2.msra.mxu0 0.0
    %985 = vmatprep.subr.mxu0 0.0
    %986 = vmatpush2.msra.mxu0 0.0
    %987 = vmatprep.subr.mxu0 0.0
    %988 = vmatpush2.msra.mxu0 0.0
    %989 = vmatprep.subr.mxu0 0.0
    %990 = vmatpush2.msra.mxu0 0.0
    %991 = vmatprep.subr.mxu0 0.0
    %992 = vmatpush2.msra.mxu0 0.0
    %993 = vmatprep.subr.mxu0 0.0
    %994 = vmatpush2.msra.mxu0 0.0
    %995 = vmatprep.mubr.f32.mxu0 0.0
    %996 = vmatmul.mubr.f32.gmra.mxu0 %v69
    %v997 = vpop.f32.mrf.mxu0
    %v998 = vadd.f32 0.0, %v997
    %v999 = vpop.f32.mrf.mxu0
    %1000 = vmatprep.mubr.f32.mxu0 0.0
    %1001 = vmatmul.mubr.f32.gmra.mxu0 %v72
    %v1002 = vpop.f32.mrf.mxu0
    %v1003 = vadd.f32 0.0, %v1002
    %v1004 = vpop.f32.mrf.mxu0
    %1005 = vdwg.mxu0
    %vm1006 = vcmask 64512
    %v1008 = vsel %vm1006, %v141, 0
    %v1011 = vsel %vm1006, %v146, 0
    %v1014 = vsel %vm1006, %v457, 0
    %v1017 = vsel %vm1006, %v462, 0
    %1019 = vmatprep.subr.mxu0 0.0
    %1020 = vmatpush1.xpose.msra.mxu0 0.0
    %1021 = vmatprep.subr.mxu0 0.0
    %1022 = vmatpush1.xpose.msra.mxu0 0.0
    %1023 = vmatprep.subr.mxu0 0.0
    %1024 = vmatpush1.xpose.msra.mxu0 0.0
    %1025 = vmatprep.subr.mxu0 0.0
    %1026 = vmatpush1.xpose.msra.mxu0 0.0
    %1027 = vmatprep.subr.mxu0 0.0
    %1028 = vmatpush1.xpose.msra.mxu0 0.0
    %1029 = vmatprep.subr.mxu0 0.0
    %1030 = vmatpush1.xpose.msra.mxu0 0.0
    %1031 = vmatprep.subr.mxu0 0.0
    %1032 = vmatpush1.xpose.msra.mxu0 0.0
    %1033 = vmatprep.subr.mxu0 0.0
    %1034 = vmatpush1.xpose.msra.mxu0 0.0
    %1035 = vmatprep.subr.mxu0 0.0
    %1036 = vmatpush1.xpose.msra.mxu0 0.0
    %1037 = vmatprep.subr.mxu0 0.0
    %1038 = vmatpush1.xpose.msra.mxu0 0.0
    %1039 = vmatprep.subr.mxu0 0.0
    %1040 = vmatpush1.xpose.msra.mxu0 0.0
    %1041 = vmatprep.subr.mxu0 0.0
    %1042 = vmatpush1.xpose.msra.mxu0 0.0
    %1043 = vmatprep.subr.mxu0 0.0
    %1044 = vmatpush1.xpose.msra.mxu0 0.0
    %1045 = vmatprep.subr.mxu0 0.0
    %1046 = vmatpush1.xpose.msra.mxu0 0.0
    %1047 = vmatprep.subr.mxu0 0.0
    %1048 = vmatpush1.xpose.msra.mxu0 %v1017
    %1049 = vmatprep.subr.mxu0 0.0
    %1050 = vmatpush1.xpose.msra.mxu0 %v1014
    %1051 = vmatprep.subr.mxu0 0.0
    %1052 = vmatpush2.xpose.msra.mxu0 0.0
    %1053 = vmatprep.subr.mxu0 0.0
    %1054 = vmatpush2.xpose.msra.mxu0 0.0
    %1055 = vmatprep.subr.mxu0 0.0
    %1056 = vmatpush2.xpose.msra.mxu0 0.0
    %1057 = vmatprep.subr.mxu0 0.0
    %1058 = vmatpush2.xpose.msra.mxu0 0.0
    %1059 = vmatprep.subr.mxu0 0.0
    %1060 = vmatpush2.xpose.msra.mxu0 0.0
    %1061 = vmatprep.subr.mxu0 0.0
    %1062 = vmatpush2.xpose.msra.mxu0 0.0
    %1063 = vmatprep.subr.mxu0 0.0
    %1064 = vmatpush2.xpose.msra.mxu0 0.0
    %1065 = vmatprep.subr.mxu0 0.0
    %1066 = vmatpush2.xpose.msra.mxu0 0.0
    %1067 = vmatprep.subr.mxu0 0.0
    %1068 = vmatpush2.xpose.msra.mxu0 0.0
    %1069 = vmatprep.subr.mxu0 0.0
    %1070 = vmatpush2.xpose.msra.mxu0 0.0
    %1071 = vmatprep.subr.mxu0 0.0
    %1072 = vmatpush2.xpose.msra.mxu0 0.0
    %1073 = vmatprep.subr.mxu0 0.0
    %1074 = vmatpush2.xpose.msra.mxu0 0.0
    %1075 = vmatprep.subr.mxu0 0.0
    %1076 = vmatpush2.xpose.msra.mxu0 0.0
    %1077 = vmatprep.subr.mxu0 0.0
    %1078 = vmatpush2.xpose.msra.mxu0 0.0
    %1079 = vmatprep.subr.mxu0 0.0
    %1080 = vmatpush2.xpose.msra.mxu0 0.0
    %1081 = vmatprep.subr.mxu0 0.0
    %1082 = vmatpush2.xpose.msra.mxu0 0.0
    %1083 = vmatprep.mubr.f32.mxu0 0.0
    %1084 = vmatmul.mubr.f32.gmra.mxu0 %v1008
    %v1085 = vpop.f32.mrf.mxu0
    %v1086 = vadd.f32 %v32, %v1085
    %v1087 = vpop.f32.mrf.mxu0
    %1088 = vmatprep.mubr.f32.mxu0 0.0
    %1089 = vmatmul.mubr.f32.gmra.mxu0 %v1011
    %v1090 = vpop.f32.mrf.mxu0
    %v1091 = vadd.f32 %v33, %v1090
    %v1092 = vpop.f32.mrf.mxu0
    %1093 = vdwg.mxu0
    %v1095 = vsel %vm1006, %v216, 0
    %v1098 = vsel %vm1006, %v221, 0
    %v1101 = vsel %vm1006, %v532, 0
    %v1104 = vsel %vm1006, %v537, 0
    %1106 = vmatprep.subr.mxu0 0.0
    %1107 = vmatpush1.xpose.msra.mxu0 0.0
    %1108 = vmatprep.subr.mxu0 0.0
    %1109 = vmatpush1.xpose.msra.mxu0 0.0
    %1110 = vmatprep.subr.mxu0 0.0
    %1111 = vmatpush1.xpose.msra.mxu0 0.0
    %1112 = vmatprep.subr.mxu0 0.0
    %1113 = vmatpush1.xpose.msra.mxu0 0.0
    %1114 = vmatprep.subr.mxu0 0.0
    %1115 = vmatpush1.xpose.msra.mxu0 0.0
    %1116 = vmatprep.subr.mxu0 0.0
    %1117 = vmatpush1.xpose.msra.mxu0 0.0
    %1118 = vmatprep.subr.mxu0 0.0
    %1119 = vmatpush1.xpose.msra.mxu0 0.0
    %1120 = vmatprep.subr.mxu0 0.0
    %1121 = vmatpush1.xpose.msra.mxu0 0.0
    %1122 = vmatprep.subr.mxu0 0.0
    %1123 = vmatpush1.xpose.msra.mxu0 0.0
    %1124 = vmatprep.subr.mxu0 0.0
    %1125 = vmatpush1.xpose.msra.mxu0 0.0
    %1126 = vmatprep.subr.mxu0 0.0
    %1127 = vmatpush1.xpose.msra.mxu0 0.0
    %1128 = vmatprep.subr.mxu0 0.0
    %1129 = vmatpush1.xpose.msra.mxu0 0.0
    %1130 = vmatprep.subr.mxu0 0.0
    %1131 = vmatpush1.xpose.msra.mxu0 0.0
    %1132 = vmatprep.subr.mxu0 0.0
    %1133 = vmatpush1.xpose.msra.mxu0 0.0
    %1134 = vmatprep.subr.mxu0 0.0
    %1135 = vmatpush1.xpose.msra.mxu0 %v1104
    %1136 = vmatprep.subr.mxu0 0.0
    %1137 = vmatpush1.xpose.msra.mxu0 %v1101
    %1138 = vmatprep.subr.mxu0 0.0
    %1139 = vmatpush2.xpose.msra.mxu0 0.0
    %1140 = vmatprep.subr.mxu0 0.0
    %1141 = vmatpush2.xpose.msra.mxu0 0.0
    %1142 = vmatprep.subr.mxu0 0.0
    %1143 = vmatpush2.xpose.msra.mxu0 0.0
    %1144 = vmatprep.subr.mxu0 0.0
    %1145 = vmatpush2.xpose.msra.mxu0 0.0
    %1146 = vmatprep.subr.mxu0 0.0
    %1147 = vmatpush2.xpose.msra.mxu0 0.0
    %1148 = vmatprep.subr.mxu0 0.0
    %1149 = vmatpush2.xpose.msra.mxu0 0.0
    %1150 = vmatprep.subr.mxu0 0.0
    %1151 = vmatpush2.xpose.msra.mxu0 0.0
    %1152 = vmatprep.subr.mxu0 0.0
    %1153 = vmatpush2.xpose.msra.mxu0 0.0
    %1154 = vmatprep.subr.mxu0 0.0
    %1155 = vmatpush2.xpose.msra.mxu0 0.0
    %1156 = vmatprep.subr.mxu0 0.0
    %1157 = vmatpush2.xpose.msra.mxu0 0.0
    %1158 = vmatprep.subr.mxu0 0.0
    %1159 = vmatpush2.xpose.msra.mxu0 0.0
    %1160 = vmatprep.subr.mxu0 0.0
    %1161 = vmatpush2.xpose.msra.mxu0 0.0
    %1162 = vmatprep.subr.mxu0 0.0
    %1163 = vmatpush2.xpose.msra.mxu0 0.0
    %1164 = vmatprep.subr.mxu0 0.0
    %1165 = vmatpush2.xpose.msra.mxu0 0.0
    %1166 = vmatprep.subr.mxu0 0.0
    %1167 = vmatpush2.xpose.msra.mxu0 0.0
    %1168 = vmatprep.subr.mxu0 0.0
    %1169 = vmatpush2.xpose.msra.mxu0 0.0
    %1170 = vmatprep.mubr.f32.mxu0 0.0
    %1171 = vmatmul.mubr.f32.gmra.mxu0 %v1095
    %v1172 = vpop.f32.mrf.mxu0
    %v1173 = vadd.f32 %v32, %v1172
    %v1174 = vpop.f32.mrf.mxu0
    %1175 = vmatprep.mubr.f32.mxu0 0.0
    %1176 = vmatmul.mubr.f32.gmra.mxu0 %v1098
    %v1177 = vpop.f32.mrf.mxu0
    %v1178 = vadd.f32 %v33, %v1177
    %v1179 = vpop.f32.mrf.mxu0
    %1180 = vdwg.mxu0
    %v1182 = vsel %vm1006, %v291, 0
    %v1185 = vsel %vm1006, %v296, 0
    %v1188 = vsel %vm1006, %v607, 0
    %v1191 = vsel %vm1006, %v612, 0
    %1193 = vmatprep.subr.mxu0 0.0
    %1194 = vmatpush1.xpose.msra.mxu0 0.0
    %1195 = vmatprep.subr.mxu0 0.0
    %1196 = vmatpush1.xpose.msra.mxu0 0.0
    %1197 = vmatprep.subr.mxu0 0.0
    %1198 = vmatpush1.xpose.msra.mxu0 0.0
    %1199 = vmatprep.subr.mxu0 0.0
    %1200 = vmatpush1.xpose.msra.mxu0 0.0
    %1201 = vmatprep.subr.mxu0 0.0
    %1202 = vmatpush1.xpose.msra.mxu0 0.0
    %1203 = vmatprep.subr.mxu0 0.0
    %1204 = vmatpush1.xpose.msra.mxu0 0.0
    %1205 = vmatprep.subr.mxu0 0.0
    %1206 = vmatpush1.xpose.msra.mxu0 0.0
    %1207 = vmatprep.subr.mxu0 0.0
    %1208 = vmatpush1.xpose.msra.mxu0 0.0
    %1209 = vmatprep.subr.mxu0 0.0
    %1210 = vmatpush1.xpose.msra.mxu0 0.0
    %1211 = vmatprep.subr.mxu0 0.0
    %1212 = vmatpush1.xpose.msra.mxu0 0.0
    %1213 = vmatprep.subr.mxu0 0.0
    %1214 = vmatpush1.xpose.msra.mxu0 0.0
    %1215 = vmatprep.subr.mxu0 0.0
    %1216 = vmatpush1.xpose.msra.mxu0 0.0
    %1217 = vmatprep.subr.mxu0 0.0
    %1218 = vmatpush1.xpose.msra.mxu0 0.0
    %1219 = vmatprep.subr.mxu0 0.0
    %1220 = vmatpush1.xpose.msra.mxu0 0.0
    %1221 = vmatprep.subr.mxu0 0.0
    %1222 = vmatpush1.xpose.msra.mxu0 %v1191
    %1223 = vmatprep.subr.mxu0 0.0
    %1224 = vmatpush1.xpose.msra.mxu0 %v1188
    %1225 = vmatprep.subr.mxu0 0.0
    %1226 = vmatpush2.xpose.msra.mxu0 0.0
    %1227 = vmatprep.subr.mxu0 0.0
    %1228 = vmatpush2.xpose.msra.mxu0 0.0
    %1229 = vmatprep.subr.mxu0 0.0
    %1230 = vmatpush2.xpose.msra.mxu0 0.0
    %1231 = vmatprep.subr.mxu0 0.0
    %1232 = vmatpush2.xpose.msra.mxu0 0.0
    %1233 = vmatprep.subr.mxu0 0.0
    %1234 = vmatpush2.xpose.msra.mxu0 0.0
    %1235 = vmatprep.subr.mxu0 0.0
    %1236 = vmatpush2.xpose.msra.mxu0 0.0
    %1237 = vmatprep.subr.mxu0 0.0
    %1238 = vmatpush2.xpose.msra.mxu0 0.0
    %1239 = vmatprep.subr.mxu0 0.0
    %1240 = vmatpush2.xpose.msra.mxu0 0.0
    %1241 = vmatprep.subr.mxu0 0.0
    %1242 = vmatpush2.xpose.msra.mxu0 0.0
    %1243 = vmatprep.subr.mxu0 0.0
    %1244 = vmatpush2.xpose.msra.mxu0 0.0
    %1245 = vmatprep.subr.mxu0 0.0
    %1246 = vmatpush2.xpose.msra.mxu0 0.0
    %1247 = vmatprep.subr.mxu0 0.0
    %1248 = vmatpush2.xpose.msra.mxu0 0.0
    %1249 = vmatprep.subr.mxu0 0.0
    %1250 = vmatpush2.xpose.msra.mxu0 0.0
    %1251 = vmatprep.subr.mxu0 0.0
    %1252 = vmatpush2.xpose.msra.mxu0 0.0
    %1253 = vmatprep.subr.mxu0 0.0
    %1254 = vmatpush2.xpose.msra.mxu0 0.0
    %1255 = vmatprep.subr.mxu0 0.0
    %1256 = vmatpush2.xpose.msra.mxu0 0.0
    %1257 = vmatprep.mubr.f32.mxu0 0.0
    %1258 = vmatmul.mubr.f32.gmra.mxu0 %v1182
    %v1259 = vpop.f32.mrf.mxu0
    %v1260 = vadd.f32 %v32, %v1259
    %v1261 = vpop.f32.mrf.mxu0
    %1262 = vmatprep.mubr.f32.mxu0 0.0
    %1263 = vmatmul.mubr.f32.gmra.mxu0 %v1185
    %v1264 = vpop.f32.mrf.mxu0
    %v1265 = vadd.f32 %v33, %v1264
    %v1266 = vpop.f32.mrf.mxu0
    %1267 = vdwg.mxu0
    %v1269 = vsel %vm1006, %v366, 0
    %v1272 = vsel %vm1006, %v371, 0
    %v1275 = vsel %vm1006, %v682, 0
    %v1278 = vsel %vm1006, %v687, 0
    %1280 = vmatprep.subr.mxu0 0.0
    %1281 = vmatpush1.xpose.msra.mxu0 0.0
    %1282 = vmatprep.subr.mxu0 0.0
    %1283 = vmatpush1.xpose.msra.mxu0 0.0
    %1284 = vmatprep.subr.mxu0 0.0
    %1285 = vmatpush1.xpose.msra.mxu0 0.0
    %1286 = vmatprep.subr.mxu0 0.0
    %1287 = vmatpush1.xpose.msra.mxu0 0.0
    %1288 = vmatprep.subr.mxu0 0.0
    %1289 = vmatpush1.xpose.msra.mxu0 0.0
    %1290 = vmatprep.subr.mxu0 0.0
    %1291 = vmatpush1.xpose.msra.mxu0 0.0
    %1292 = vmatprep.subr.mxu0 0.0
    %1293 = vmatpush1.xpose.msra.mxu0 0.0
    %1294 = vmatprep.subr.mxu0 0.0
    %1295 = vmatpush1.xpose.msra.mxu0 0.0
    %1296 = vmatprep.subr.mxu0 0.0
    %1297 = vmatpush1.xpose.msra.mxu0 0.0
    %1298 = vmatprep.subr.mxu0 0.0
    %1299 = vmatpush1.xpose.msra.mxu0 0.0
    %1300 = vmatprep.subr.mxu0 0.0
    %1301 = vmatpush1.xpose.msra.mxu0 0.0
    %1302 = vmatprep.subr.mxu0 0.0
    %1303 = vmatpush1.xpose.msra.mxu0 0.0
    %1304 = vmatprep.subr.mxu0 0.0
    %1305 = vmatpush1.xpose.msra.mxu0 0.0
    %1306 = vmatprep.subr.mxu0 0.0
    %1307 = vmatpush1.xpose.msra.mxu0 0.0
    %1308 = vmatprep.subr.mxu0 0.0
    %1309 = vmatpush1.xpose.msra.mxu0 %v1278
    %1310 = vmatprep.subr.mxu0 0.0
    %1311 = vmatpush1.xpose.msra.mxu0 %v1275
    %1312 = vmatprep.subr.mxu0 0.0
    %1313 = vmatpush2.xpose.msra.mxu0 0.0
    %1314 = vmatprep.subr.mxu0 0.0
    %1315 = vmatpush2.xpose.msra.mxu0 0.0
    %1316 = vmatprep.subr.mxu0 0.0
    %1317 = vmatpush2.xpose.msra.mxu0 0.0
    %1318 = vmatprep.subr.mxu0 0.0
    %1319 = vmatpush2.xpose.msra.mxu0 0.0
    %1320 = vmatprep.subr.mxu0 0.0
    %1321 = vmatpush2.xpose.msra.mxu0 0.0
    %1322 = vmatprep.subr.mxu0 0.0
    %1323 = vmatpush2.xpose.msra.mxu0 0.0
    %1324 = vmatprep.subr.mxu0 0.0
    %1325 = vmatpush2.xpose.msra.mxu0 0.0
    %1326 = vmatprep.subr.mxu0 0.0
    %1327 = vmatpush2.xpose.msra.mxu0 0.0
    %1328 = vmatprep.subr.mxu0 0.0
    %1329 = vmatpush2.xpose.msra.mxu0 0.0
    %1330 = vmatprep.subr.mxu0 0.0
    %1331 = vmatpush2.xpose.msra.mxu0 0.0
    %1332 = vmatprep.subr.mxu0 0.0
    %1333 = vmatpush2.xpose.msra.mxu0 0.0
    %1334 = vmatprep.subr.mxu0 0.0
    %1335 = vmatpush2.xpose.msra.mxu0 0.0
    %1336 = vmatprep.subr.mxu0 0.0
    %1337 = vmatpush2.xpose.msra.mxu0 0.0
    %1338 = vmatprep.subr.mxu0 0.0
    %1339 = vmatpush2.xpose.msra.mxu0 0.0
    %1340 = vmatprep.subr.mxu0 0.0
    %1341 = vmatpush2.xpose.msra.mxu0 0.0
    %1342 = vmatprep.subr.mxu0 0.0
    %1343 = vmatpush2.xpose.msra.mxu0 0.0
    %1344 = vmatprep.mubr.f32.mxu0 0.0
    %1345 = vmatmul.mubr.f32.gmra.mxu0 %v1269
    %v1346 = vpop.f32.mrf.mxu0
    %v1347 = vadd.f32 %v32, %v1346
    %v1348 = vpop.f32.mrf.mxu0
    %1349 = vmatprep.mubr.f32.mxu0 0.0
    %1350 = vmatmul.mubr.f32.gmra.mxu0 %v1272
    %v1351 = vpop.f32.mrf.mxu0
    %v1352 = vadd.f32 %v33, %v1351
    %v1353 = vpop.f32.mrf.mxu0
    %1354 = vdwg.mxu0
    %v1355 = vmax.f32 %v1086, -3.4028235e+38
    %v1356 = vmax.f32 %v1091, -3.4028235e+38
    %v1357 = vmax.f32 %v1173, -3.4028235e+38
    %v1358 = vmax.f32 %v1178, -3.4028235e+38
    %v1359 = vmax.f32 %v1260, -3.4028235e+38
    %v1360 = vmax.f32 %v1265, -3.4028235e+38
    %v1361 = vmax.f32 %v1347, -3.4028235e+38
    %v1362 = vmax.f32 %v1352, -3.4028235e+38
    %vm1363 = vcmask 130048
    %v1364 = vsel %vm1363, %v1355, -inf
    %1365 = vmax.xlane.f32.xlu0 %v1364
    %v1366 = vpop.xlane.xlu0 %1365
    %v1367 = vsel %vm1363, %v1356, -inf
    %1368 = vmax.xlane.f32.xlu0 %v1367
    %v1369 = vpop.xlane.xlu0 %1368
    %v1370 = vsel %vm1363, %v1357, -inf
    %1371 = vmax.xlane.f32.xlu0 %v1370
    %v1372 = vpop.xlane.xlu0 %1371
    %v1373 = vsel %vm1363, %v1358, -inf
    %1374 = vmax.xlane.f32.xlu0 %v1373
    %v1375 = vpop.xlane.xlu0 %1374
    %v1376 = vsel %vm1363, %v1359, -inf
    %1377 = vmax.xlane.f32.xlu0 %v1376
    %v1378 = vpop.xlane.xlu0 %1377
    %v1379 = vsel %vm1363, %v1360, -inf
    %1380 = vmax.xlane.f32.xlu0 %v1379
    %v1381 = vpop.xlane.xlu0 %1380
    %v1382 = vsel %vm1363, %v1361, -inf
    %1383 = vmax.xlane.f32.xlu0 %v1382
    %v1384 = vpop.xlane.xlu0 %1383
    %v1385 = vsel %vm1363, %v1362, -inf
    %1386 = vmax.xlane.f32.xlu0 %v1385
    %v1387 = vpop.xlane.xlu0 %1386
    %v1388 = vsub.f32 %v1355, %v1366
    %v1389 = vsub.f32 %v1356, %v1369
    %v1390 = vsub.f32 %v1357, %v1372
    %v1391 = vsub.f32 %v1358, %v1375
    %v1392 = vsub.f32 %v1359, %v1378
    %v1393 = vsub.f32 %v1360, %v1381
    %v1394 = vsub.f32 %v1361, %v1384
    %v1395 = vsub.f32 %v1362, %v1387
    %v1396 = vmul.f32 %v1388, 1.442695
    %v1397 = vpow.pop %v1396
    %v1398 = vmul.f32 %v1389, 1.442695
    %v1399 = vpow.pop %v1398
    %v1400 = vmul.f32 %v1390, 1.442695
    %v1401 = vpow.pop %v1400
    %v1402 = vmul.f32 %v1391, 1.442695
    %v1403 = vpow.pop %v1402
    %v1404 = vmul.f32 %v1392, 1.442695
    %v1405 = vpow.pop %v1404
    %v1406 = vmul.f32 %v1393, 1.442695
    %v1407 = vpow.pop %v1406
    %v1408 = vmul.f32 %v1394, 1.442695
    %v1409 = vpow.pop %v1408
    %v1410 = vmul.f32 %v1395, 1.442695
    %v1411 = vpow.pop %v1410
    %v1412 = vsel %vm1363, %v1397, 0.0
    %1413 = vadd.xlane.f32.xlu0 %v1412
    %v1414 = vpop.xlane.xlu0 %1413
    %v1415 = vsel %vm1363, %v1399, 0.0
    %1416 = vadd.xlane.f32.xlu0 %v1415
    %v1417 = vpop.xlane.xlu0 %1416
    %v1418 = vsel %vm1363, %v1401, 0.0
    %1419 = vadd.xlane.f32.xlu0 %v1418
    %v1420 = vpop.xlane.xlu0 %1419
    %v1421 = vsel %vm1363, %v1403, 0.0
    %1422 = vadd.xlane.f32.xlu0 %v1421
    %v1423 = vpop.xlane.xlu0 %1422
    %v1424 = vsel %vm1363, %v1405, 0.0
    %1425 = vadd.xlane.f32.xlu0 %v1424
    %v1426 = vpop.xlane.xlu0 %1425
    %v1427 = vsel %vm1363, %v1407, 0.0
    %1428 = vadd.xlane.f32.xlu0 %v1427
    %v1429 = vpop.xlane.xlu0 %1428
    %v1430 = vsel %vm1363, %v1409, 0.0
    %1431 = vadd.xlane.f32.xlu0 %v1430
    %v1432 = vpop.xlane.xlu0 %1431
    %v1433 = vsel %vm1363, %v1411, 0.0
    %1434 = vadd.xlane.f32.xlu0 %v1433
    %v1435 = vpop.xlane.xlu0 %1434
    %v1436 = vrcp.pop %v1414
    %v1437 = vrcp.pop %v1417
    %v1438 = vrcp.pop %v1420
    %v1439 = vrcp.pop %v1423
    %v1440 = vrcp.pop %v1426
    %v1441 = vrcp.pop %v1429
    %v1442 = vrcp.pop %v1432
    %v1443 = vrcp.pop %v1435
    %v1444 = vmul.f32 %v1397, %v1436
    %v1445 = vmul.f32 %v1399, %v1437
    %v1446 = vmul.f32 %v1401, %v1438
    %v1447 = vmul.f32 %v1403, %v1439
    %v1448 = vmul.f32 %v1405, %v1440
    %v1449 = vmul.f32 %v1407, %v1441
    %v1450 = vmul.f32 %v1409, %v1442
    %v1451 = vmul.f32 %v1411, %v1443
    %v1453 = vsel %vm1363, %v1444, 0
    %v1456 = vsel %vm1363, %v1445, 0
    %1458 = vmatprep.subr.mxu0 0.0
    %1459 = vmatpush1.msra.mxu0 0.0
    %1460 = vmatprep.subr.mxu0 0.0
    %1461 = vmatpush1.msra.mxu0 0.0
    %1462 = vmatprep.subr.mxu0 0.0
    %1463 = vmatpush1.msra.mxu0 0.0
    %1464 = vmatprep.subr.mxu0 0.0
    %1465 = vmatpush1.msra.mxu0 0.0
    %1466 = vmatprep.subr.mxu0 0.0
    %1467 = vmatpush1.msra.mxu0 0.0
    %1468 = vmatprep.subr.mxu0 0.0
    %1469 = vmatpush1.msra.mxu0 0.0
    %1470 = vmatprep.subr.mxu0 0.0
    %1471 = vmatpush1.msra.mxu0 0.0
    %1472 = vmatprep.subr.mxu0 0.0
    %1473 = vmatpush1.msra.mxu0 0.0
    %1474 = vmatprep.subr.mxu0 0.0
    %1475 = vmatpush1.msra.mxu0 0.0
    %1476 = vmatprep.subr.mxu0 0.0
    %1477 = vmatpush1.msra.mxu0 0.0
    %1478 = vmatprep.subr.mxu0 0.0
    %1479 = vmatpush1.msra.mxu0 0.0
    %1480 = vmatprep.subr.mxu0 0.0
    %1481 = vmatpush1.msra.mxu0 0.0
    %1482 = vmatprep.subr.mxu0 0.0
    %1483 = vmatpush1.msra.mxu0 0.0
    %1484 = vmatprep.subr.mxu0 0.0
    %1485 = vmatpush1.msra.mxu0 0.0
    %1486 = vmatprep.subr.mxu0 0.0
    %1487 = vmatpush1.msra.mxu0 %v778
    %1488 = vmatprep.subr.mxu0 0.0
    %1489 = vmatpush1.msra.mxu0 %v773
    %1490 = vmatprep.subr.mxu0 0.0
    %1491 = vmatpush2.msra.mxu0 0.0
    %1492 = vmatprep.subr.mxu0 0.0
    %1493 = vmatpush2.msra.mxu0 0.0
    %1494 = vmatprep.subr.mxu0 0.0
    %1495 = vmatpush2.msra.mxu0 0.0
    %1496 = vmatprep.subr.mxu0 0.0
    %1497 = vmatpush2.msra.mxu0 0.0
    %1498 = vmatprep.subr.mxu0 0.0
    %1499 = vmatpush2.msra.mxu0 0.0
    %1500 = vmatprep.subr.mxu0 0.0
    %1501 = vmatpush2.msra.mxu0 0.0
    %1502 = vmatprep.subr.mxu0 0.0
    %1503 = vmatpush2.msra.mxu0 0.0
    %1504 = vmatprep.subr.mxu0 0.0
    %1505 = vmatpush2.msra.mxu0 0.0
    %1506 = vmatprep.subr.mxu0 0.0
    %1507 = vmatpush2.msra.mxu0 0.0
    %1508 = vmatprep.subr.mxu0 0.0
    %1509 = vmatpush2.msra.mxu0 0.0
    %1510 = vmatprep.subr.mxu0 0.0
    %1511 = vmatpush2.msra.mxu0 0.0
    %1512 = vmatprep.subr.mxu0 0.0
    %1513 = vmatpush2.msra.mxu0 0.0
    %1514 = vmatprep.subr.mxu0 0.0
    %1515 = vmatpush2.msra.mxu0 0.0
    %1516 = vmatprep.subr.mxu0 0.0
    %1517 = vmatpush2.msra.mxu0 0.0
    %1518 = vmatprep.subr.mxu0 0.0
    %1519 = vmatpush2.msra.mxu0 0.0
    %1520 = vmatprep.subr.mxu0 0.0
    %1521 = vmatpush2.msra.mxu0 0.0
    %1522 = vmatprep.mubr.f32.mxu0 0.0
    %1523 = vmatmul.mubr.f32.gmra.mxu0 %v1453
    %v1524 = vpop.f32.mrf.mxu0
    %v1525 = vadd.f32 0.0, %v1524
    %v1526 = vpop.f32.mrf.mxu0
    %1527 = vmatprep.mubr.f32.mxu0 0.0
    %1528 = vmatmul.mubr.f32.gmra.mxu0 %v1456
    %v1529 = vpop.f32.mrf.mxu0
    %v1530 = vadd.f32 0.0, %v1529
    %v1531 = vpop.f32.mrf.mxu0
    %1532 = vdwg.mxu0
    %v1534 = vsel %vm1363, %v1446, 0
    %v1537 = vsel %vm1363, %v1447, 0
    %1539 = vmatprep.subr.mxu0 0.0
    %1540 = vmatpush1.msra.mxu0 0.0
    %1541 = vmatprep.subr.mxu0 0.0
    %1542 = vmatpush1.msra.mxu0 0.0
    %1543 = vmatprep.subr.mxu0 0.0
    %1544 = vmatpush1.msra.mxu0 0.0
    %1545 = vmatprep.subr.mxu0 0.0
    %1546 = vmatpush1.msra.mxu0 0.0
    %1547 = vmatprep.subr.mxu0 0.0
    %1548 = vmatpush1.msra.mxu0 0.0
    %1549 = vmatprep.subr.mxu0 0.0
    %1550 = vmatpush1.msra.mxu0 0.0
    %1551 = vmatprep.subr.mxu0 0.0
    %1552 = vmatpush1.msra.mxu0 0.0
    %1553 = vmatprep.subr.mxu0 0.0
    %1554 = vmatpush1.msra.mxu0 0.0
    %1555 = vmatprep.subr.mxu0 0.0
    %1556 = vmatpush1.msra.mxu0 0.0
    %1557 = vmatprep.subr.mxu0 0.0
    %1558 = vmatpush1.msra.mxu0 0.0
    %1559 = vmatprep.subr.mxu0 0.0
    %1560 = vmatpush1.msra.mxu0 0.0
    %1561 = vmatprep.subr.mxu0 0.0
    %1562 = vmatpush1.msra.mxu0 0.0
    %1563 = vmatprep.subr.mxu0 0.0
    %1564 = vmatpush1.msra.mxu0 0.0
    %1565 = vmatprep.subr.mxu0 0.0
    %1566 = vmatpush1.msra.mxu0 0.0
    %1567 = vmatprep.subr.mxu0 0.0
    %1568 = vmatpush1.msra.mxu0 %v853
    %1569 = vmatprep.subr.mxu0 0.0
    %1570 = vmatpush1.msra.mxu0 %v848
    %1571 = vmatprep.subr.mxu0 0.0
    %1572 = vmatpush2.msra.mxu0 0.0
    %1573 = vmatprep.subr.mxu0 0.0
    %1574 = vmatpush2.msra.mxu0 0.0
    %1575 = vmatprep.subr.mxu0 0.0
    %1576 = vmatpush2.msra.mxu0 0.0
    %1577 = vmatprep.subr.mxu0 0.0
    %1578 = vmatpush2.msra.mxu0 0.0
    %1579 = vmatprep.subr.mxu0 0.0
    %1580 = vmatpush2.msra.mxu0 0.0
    %1581 = vmatprep.subr.mxu0 0.0
    %1582 = vmatpush2.msra.mxu0 0.0
    %1583 = vmatprep.subr.mxu0 0.0
    %1584 = vmatpush2.msra.mxu0 0.0
    %1585 = vmatprep.subr.mxu0 0.0
    %1586 = vmatpush2.msra.mxu0 0.0
    %1587 = vmatprep.subr.mxu0 0.0
    %1588 = vmatpush2.msra.mxu0 0.0
    %1589 = vmatprep.subr.mxu0 0.0
    %1590 = vmatpush2.msra.mxu0 0.0
    %1591 = vmatprep.subr.mxu0 0.0
    %1592 = vmatpush2.msra.mxu0 0.0
    %1593 = vmatprep.subr.mxu0 0.0
    %1594 = vmatpush2.msra.mxu0 0.0
    %1595 = vmatprep.subr.mxu0 0.0
    %1596 = vmatpush2.msra.mxu0 0.0
    %1597 = vmatprep.subr.mxu0 0.0
    %1598 = vmatpush2.msra.mxu0 0.0
    %1599 = vmatprep.subr.mxu0 0.0
    %1600 = vmatpush2.msra.mxu0 0.0
    %1601 = vmatprep.subr.mxu0 0.0
    %1602 = vmatpush2.msra.mxu0 0.0
    %1603 = vmatprep.mubr.f32.mxu0 0.0
    %1604 = vmatmul.mubr.f32.gmra.mxu0 %v1534
    %v1605 = vpop.f32.mrf.mxu0
    %v1606 = vadd.f32 0.0, %v1605
    %v1607 = vpop.f32.mrf.mxu0
    %1608 = vmatprep.mubr.f32.mxu0 0.0
    %1609 = vmatmul.mubr.f32.gmra.mxu0 %v1537
    %v1610 = vpop.f32.mrf.mxu0
    %v1611 = vadd.f32 0.0, %v1610
    %v1612 = vpop.f32.mrf.mxu0
    %1613 = vdwg.mxu0
    %v1615 = vsel %vm1363, %v1448, 0
    %v1618 = vsel %vm1363, %v1449, 0
    %1620 = vmatprep.subr.mxu0 0.0
    %1621 = vmatpush1.msra.mxu0 0.0
    %1622 = vmatprep.subr.mxu0 0.0
    %1623 = vmatpush1.msra.mxu0 0.0
    %1624 = vmatprep.subr.mxu0 0.0
    %1625 = vmatpush1.msra.mxu0 0.0
    %1626 = vmatprep.subr.mxu0 0.0
    %1627 = vmatpush1.msra.mxu0 0.0
    %1628 = vmatprep.subr.mxu0 0.0
    %1629 = vmatpush1.msra.mxu0 0.0
    %1630 = vmatprep.subr.mxu0 0.0
    %1631 = vmatpush1.msra.mxu0 0.0
    %1632 = vmatprep.subr.mxu0 0.0
    %1633 = vmatpush1.msra.mxu0 0.0
    %1634 = vmatprep.subr.mxu0 0.0
    %1635 = vmatpush1.msra.mxu0 0.0
    %1636 = vmatprep.subr.mxu0 0.0
    %1637 = vmatpush1.msra.mxu0 0.0
    %1638 = vmatprep.subr.mxu0 0.0
    %1639 = vmatpush1.msra.mxu0 0.0
    %1640 = vmatprep.subr.mxu0 0.0
    %1641 = vmatpush1.msra.mxu0 0.0
    %1642 = vmatprep.subr.mxu0 0.0
    %1643 = vmatpush1.msra.mxu0 0.0
    %1644 = vmatprep.subr.mxu0 0.0
    %1645 = vmatpush1.msra.mxu0 0.0
    %1646 = vmatprep.subr.mxu0 0.0
    %1647 = vmatpush1.msra.mxu0 0.0
    %1648 = vmatprep.subr.mxu0 0.0
    %1649 = vmatpush1.msra.mxu0 %v928
    %1650 = vmatprep.subr.mxu0 0.0
    %1651 = vmatpush1.msra.mxu0 %v923
    %1652 = vmatprep.subr.mxu0 0.0
    %1653 = vmatpush2.msra.mxu0 0.0
    %1654 = vmatprep.subr.mxu0 0.0
    %1655 = vmatpush2.msra.mxu0 0.0
    %1656 = vmatprep.subr.mxu0 0.0
    %1657 = vmatpush2.msra.mxu0 0.0
    %1658 = vmatprep.subr.mxu0 0.0
    %1659 = vmatpush2.msra.mxu0 0.0
    %1660 = vmatprep.subr.mxu0 0.0
    %1661 = vmatpush2.msra.mxu0 0.0
    %1662 = vmatprep.subr.mxu0 0.0
    %1663 = vmatpush2.msra.mxu0 0.0
    %1664 = vmatprep.subr.mxu0 0.0
    %1665 = vmatpush2.msra.mxu0 0.0
    %1666 = vmatprep.subr.mxu0 0.0
    %1667 = vmatpush2.msra.mxu0 0.0
    %1668 = vmatprep.subr.mxu0 0.0
    %1669 = vmatpush2.msra.mxu0 0.0
    %1670 = vmatprep.subr.mxu0 0.0
    %1671 = vmatpush2.msra.mxu0 0.0
    %1672 = vmatprep.subr.mxu0 0.0
    %1673 = vmatpush2.msra.mxu0 0.0
    %1674 = vmatprep.subr.mxu0 0.0
    %1675 = vmatpush2.msra.mxu0 0.0
    %1676 = vmatprep.subr.mxu0 0.0
    %1677 = vmatpush2.msra.mxu0 0.0
    %1678 = vmatprep.subr.mxu0 0.0
    %1679 = vmatpush2.msra.mxu0 0.0
    %1680 = vmatprep.subr.mxu0 0.0
    %1681 = vmatpush2.msra.mxu0 0.0
    %1682 = vmatprep.subr.mxu0 0.0
    %1683 = vmatpush2.msra.mxu0 0.0
    %1684 = vmatprep.mubr.f32.mxu0 0.0
    %1685 = vmatmul.mubr.f32.gmra.mxu0 %v1615
    %v1686 = vpop.f32.mrf.mxu0
    %v1687 = vadd.f32 0.0, %v1686
    %v1688 = vpop.f32.mrf.mxu0
    %1689 = vmatprep.mubr.f32.mxu0 0.0
    %1690 = vmatmul.mubr.f32.gmra.mxu0 %v1618
    %v1691 = vpop.f32.mrf.mxu0
    %v1692 = vadd.f32 0.0, %v1691
    %v1693 = vpop.f32.mrf.mxu0
    %1694 = vdwg.mxu0
    %v1696 = vsel %vm1363, %v1450, 0
    %v1699 = vsel %vm1363, %v1451, 0
    %1701 = vmatprep.subr.mxu0 0.0
    %1702 = vmatpush1.msra.mxu0 0.0
    %1703 = vmatprep.subr.mxu0 0.0
    %1704 = vmatpush1.msra.mxu0 0.0
    %1705 = vmatprep.subr.mxu0 0.0
    %1706 = vmatpush1.msra.mxu0 0.0
    %1707 = vmatprep.subr.mxu0 0.0
    %1708 = vmatpush1.msra.mxu0 0.0
    %1709 = vmatprep.subr.mxu0 0.0
    %1710 = vmatpush1.msra.mxu0 0.0
    %1711 = vmatprep.subr.mxu0 0.0
    %1712 = vmatpush1.msra.mxu0 0.0
    %1713 = vmatprep.subr.mxu0 0.0
    %1714 = vmatpush1.msra.mxu0 0.0
    %1715 = vmatprep.subr.mxu0 0.0
    %1716 = vmatpush1.msra.mxu0 0.0
    %1717 = vmatprep.subr.mxu0 0.0
    %1718 = vmatpush1.msra.mxu0 0.0
    %1719 = vmatprep.subr.mxu0 0.0
    %1720 = vmatpush1.msra.mxu0 0.0
    %1721 = vmatprep.subr.mxu0 0.0
    %1722 = vmatpush1.msra.mxu0 0.0
    %1723 = vmatprep.subr.mxu0 0.0
    %1724 = vmatpush1.msra.mxu0 0.0
    %1725 = vmatprep.subr.mxu0 0.0
    %1726 = vmatpush1.msra.mxu0 0.0
    %1727 = vmatprep.subr.mxu0 0.0
    %1728 = vmatpush1.msra.mxu0 0.0
    %1729 = vmatprep.subr.mxu0 0.0
    %1730 = vmatpush1.msra.mxu0 %v1003
    %1731 = vmatprep.subr.mxu0 0.0
    %1732 = vmatpush1.msra.mxu0 %v998
    %1733 = vmatprep.subr.mxu0 0.0
    %1734 = vmatpush2.msra.mxu0 0.0
    %1735 = vmatprep.subr.mxu0 0.0
    %1736 = vmatpush2.msra.mxu0 0.0
    %1737 = vmatprep.subr.mxu0 0.0
    %1738 = vmatpush2.msra.mxu0 0.0
    %1739 = vmatprep.subr.mxu0 0.0
    %1740 = vmatpush2.msra.mxu0 0.0
    %1741 = vmatprep.subr.mxu0 0.0
    %1742 = vmatpush2.msra.mxu0 0.0
    %1743 = vmatprep.subr.mxu0 0.0
    %1744 = vmatpush2.msra.mxu0 0.0
    %1745 = vmatprep.subr.mxu0 0.0
    %1746 = vmatpush2.msra.mxu0 0.0
    %1747 = vmatprep.subr.mxu0 0.0
    %1748 = vmatpush2.msra.mxu0 0.0
    %1749 = vmatprep.subr.mxu0 0.0
    %1750 = vmatpush2.msra.mxu0 0.0
    %1751 = vmatprep.subr.mxu0 0.0
    %1752 = vmatpush2.msra.mxu0 0.0
    %1753 = vmatprep.subr.mxu0 0.0
    %1754 = vmatpush2.msra.mxu0 0.0
    %1755 = vmatprep.subr.mxu0 0.0
    %1756 = vmatpush2.msra.mxu0 0.0
    %1757 = vmatprep.subr.mxu0 0.0
    %1758 = vmatpush2.msra.mxu0 0.0
    %1759 = vmatprep.subr.mxu0 0.0
    %1760 = vmatpush2.msra.mxu0 0.0
    %1761 = vmatprep.subr.mxu0 0.0
    %1762 = vmatpush2.msra.mxu0 0.0
    %1763 = vmatprep.subr.mxu0 0.0
    %1764 = vmatpush2.msra.mxu0 0.0
    %1765 = vmatprep.mubr.f32.mxu0 0.0
    %1766 = vmatmul.mubr.f32.gmra.mxu0 %v1696
    %v1767 = vpop.f32.mrf.mxu0
    %v1768 = vadd.f32 0.0, %v1767
    %v1769 = vpop.f32.mrf.mxu0
    %1770 = vmatprep.mubr.f32.mxu0 0.0
    %1771 = vmatmul.mubr.f32.gmra.mxu0 %v1699
    %v1772 = vpop.f32.mrf.mxu0
    %v1773 = vadd.f32 0.0, %v1772
    %v1774 = vpop.f32.mrf.mxu0
    %1775 = vdwg.mxu0
    %v1776 = vld [vmem:[%s5] sm:$0xff]
    %v1777 = vld [vmem:[%s5 + $0x8] sm:$0xff]
    %v1778 = vld [vmem:[%s5 + $0x10] sm:$0xff]
    %v1779 = vld [vmem:[%s5 + $0x18] sm:$0xff]
    %v1781 = vsel %vm1006, %v1525, 0
    %v1784 = vsel %vm1006, %v1530, 0
    %1786 = vmatprep.subr.mxu0 0.0
    %1787 = vmatpush1.msra.mxu0 0.0
    %1788 = vmatprep.subr.mxu0 0.0
    %1789 = vmatpush1.msra.mxu0 0.0
    %1790 = vmatprep.subr.mxu0 0.0
    %1791 = vmatpush1.msra.mxu0 0.0
    %1792 = vmatprep.subr.mxu0 0.0
    %1793 = vmatpush1.msra.mxu0 0.0
    %1794 = vmatprep.subr.mxu0 0.0
    %1795 = vmatpush1.msra.mxu0 0.0
    %1796 = vmatprep.subr.mxu0 0.0
    %1797 = vmatpush1.msra.mxu0 0.0
    %1798 = vmatprep.subr.mxu0 0.0
    %1799 = vmatpush1.msra.mxu0 0.0
    %1800 = vmatprep.subr.mxu0 0.0
    %1801 = vmatpush1.msra.mxu0 0.0
    %1802 = vmatprep.subr.mxu0 0.0
    %1803 = vmatpush1.msra.mxu0 0.0
    %1804 = vmatprep.subr.mxu0 0.0
    %1805 = vmatpush1.msra.mxu0 0.0
    %1806 = vmatprep.subr.mxu0 0.0
    %1807 = vmatpush1.msra.mxu0 0.0
    %1808 = vmatprep.subr.mxu0 0.0
    %1809 = vmatpush1.msra.mxu0 0.0
    %1810 = vmatprep.subr.mxu0 0.0
    %1811 = vmatpush1.msra.mxu0 0.0
    %1812 = vmatprep.subr.mxu0 0.0
    %1813 = vmatpush1.msra.mxu0 0.0
    %1814 = vmatprep.subr.mxu0 0.0
    %1815 = vmatpush1.msra.mxu0 0.0
    %1816 = vmatprep.subr.mxu0 0.0
    %1817 = vmatpush1.msra.mxu0 %v1776
    %1818 = vmatprep.subr.mxu0 0.0
    %1819 = vmatpush2.msra.mxu0 0.0
    %1820 = vmatprep.subr.mxu0 0.0
    %1821 = vmatpush2.msra.mxu0 0.0
    %1822 = vmatprep.subr.mxu0 0.0
    %1823 = vmatpush2.msra.mxu0 0.0
    %1824 = vmatprep.subr.mxu0 0.0
    %1825 = vmatpush2.msra.mxu0 0.0
    %1826 = vmatprep.subr.mxu0 0.0
    %1827 = vmatpush2.msra.mxu0 0.0
    %1828 = vmatprep.subr.mxu0 0.0
    %1829 = vmatpush2.msra.mxu0 0.0
    %1830 = vmatprep.subr.mxu0 0.0
    %1831 = vmatpush2.msra.mxu0 0.0
    %1832 = vmatprep.subr.mxu0 0.0
    %1833 = vmatpush2.msra.mxu0 0.0
    %1834 = vmatprep.subr.mxu0 0.0
    %1835 = vmatpush2.msra.mxu0 0.0
    %1836 = vmatprep.subr.mxu0 0.0
    %1837 = vmatpush2.msra.mxu0 0.0
    %1838 = vmatprep.subr.mxu0 0.0
    %1839 = vmatpush2.msra.mxu0 0.0
    %1840 = vmatprep.subr.mxu0 0.0
    %1841 = vmatpush2.msra.mxu0 0.0
    %1842 = vmatprep.subr.mxu0 0.0
    %1843 = vmatpush2.msra.mxu0 0.0
    %1844 = vmatprep.subr.mxu0 0.0
    %1845 = vmatpush2.msra.mxu0 0.0
    %1846 = vmatprep.subr.mxu0 0.0
    %1847 = vmatpush2.msra.mxu0 0.0
    %1848 = vmatprep.subr.mxu0 0.0
    %1849 = vmatpush2.msra.mxu0 0.0
    %1850 = vmatprep.mubr.f32.mxu0 0.0
    %1851 = vmatmul.mubr.f32.gmra.mxu0 %v1781
    %v1852 = vpop.f32.mrf.mxu0
    %v1853 = vadd.f32 0.0, %v1852
    %v1854 = vpop.f32.mrf.mxu0
    %1855 = vmatprep.mubr.f32.mxu0 0.0
    %1856 = vmatmul.mubr.f32.gmra.mxu0 %v1784
    %v1857 = vpop.f32.mrf.mxu0
    %v1858 = vadd.f32 0.0, %v1857
    %v1859 = vpop.f32.mrf.mxu0
    %1860 = vdwg.mxu0
    %v1862 = vsel %vm1006, %v1606, 0
    %v1865 = vsel %vm1006, %v1611, 0
    %1867 = vmatprep.subr.mxu0 0.0
    %1868 = vmatpush1.msra.mxu0 0.0
    %1869 = vmatprep.subr.mxu0 0.0
    %1870 = vmatpush1.msra.mxu0 0.0
    %1871 = vmatprep.subr.mxu0 0.0
    %1872 = vmatpush1.msra.mxu0 0.0
    %1873 = vmatprep.subr.mxu0 0.0
    %1874 = vmatpush1.msra.mxu0 0.0
    %1875 = vmatprep.subr.mxu0 0.0
    %1876 = vmatpush1.msra.mxu0 0.0
    %1877 = vmatprep.subr.mxu0 0.0
    %1878 = vmatpush1.msra.mxu0 0.0
    %1879 = vmatprep.subr.mxu0 0.0
    %1880 = vmatpush1.msra.mxu0 0.0
    %1881 = vmatprep.subr.mxu0 0.0
    %1882 = vmatpush1.msra.mxu0 0.0
    %1883 = vmatprep.subr.mxu0 0.0
    %1884 = vmatpush1.msra.mxu0 0.0
    %1885 = vmatprep.subr.mxu0 0.0
    %1886 = vmatpush1.msra.mxu0 0.0
    %1887 = vmatprep.subr.mxu0 0.0
    %1888 = vmatpush1.msra.mxu0 0.0
    %1889 = vmatprep.subr.mxu0 0.0
    %1890 = vmatpush1.msra.mxu0 0.0
    %1891 = vmatprep.subr.mxu0 0.0
    %1892 = vmatpush1.msra.mxu0 0.0
    %1893 = vmatprep.subr.mxu0 0.0
    %1894 = vmatpush1.msra.mxu0 0.0
    %1895 = vmatprep.subr.mxu0 0.0
    %1896 = vmatpush1.msra.mxu0 0.0
    %1897 = vmatprep.subr.mxu0 0.0
    %1898 = vmatpush1.msra.mxu0 %v1777
    %1899 = vmatprep.subr.mxu0 0.0
    %1900 = vmatpush2.msra.mxu0 0.0
    %1901 = vmatprep.subr.mxu0 0.0
    %1902 = vmatpush2.msra.mxu0 0.0
    %1903 = vmatprep.subr.mxu0 0.0
    %1904 = vmatpush2.msra.mxu0 0.0
    %1905 = vmatprep.subr.mxu0 0.0
    %1906 = vmatpush2.msra.mxu0 0.0
    %1907 = vmatprep.subr.mxu0 0.0
    %1908 = vmatpush2.msra.mxu0 0.0
    %1909 = vmatprep.subr.mxu0 0.0
    %1910 = vmatpush2.msra.mxu0 0.0
    %1911 = vmatprep.subr.mxu0 0.0
    %1912 = vmatpush2.msra.mxu0 0.0
    %1913 = vmatprep.subr.mxu0 0.0
    %1914 = vmatpush2.msra.mxu0 0.0
    %1915 = vmatprep.subr.mxu0 0.0
    %1916 = vmatpush2.msra.mxu0 0.0
    %1917 = vmatprep.subr.mxu0 0.0
    %1918 = vmatpush2.msra.mxu0 0.0
    %1919 = vmatprep.subr.mxu0 0.0
    %1920 = vmatpush2.msra.mxu0 0.0
    %1921 = vmatprep.subr.mxu0 0.0
    %1922 = vmatpush2.msra.mxu0 0.0
    %1923 = vmatprep.subr.mxu0 0.0
    %1924 = vmatpush2.msra.mxu0 0.0
    %1925 = vmatprep.subr.mxu0 0.0
    %1926 = vmatpush2.msra.mxu0 0.0
    %1927 = vmatprep.subr.mxu0 0.0
    %1928 = vmatpush2.msra.mxu0 0.0
    %1929 = vmatprep.subr.mxu0 0.0
    %1930 = vmatpush2.msra.mxu0 0.0
    %1931 = vmatprep.mubr.f32.mxu0 0.0
    %1932 = vmatmul.mubr.f32.gmra.mxu0 %v1862
    %v1933 = vpop.f32.mrf.mxu0
    %v1934 = vadd.f32 0.0, %v1933
    %v1935 = vpop.f32.mrf.mxu0
    %1936 = vmatprep.mubr.f32.mxu0 0.0
    %1937 = vmatmul.mubr.f32.gmra.mxu0 %v1865
    %v1938 = vpop.f32.mrf.mxu0
    %v1939 = vadd.f32 0.0, %v1938
    %v1940 = vpop.f32.mrf.mxu0
    %1941 = vdwg.mxu0
    %v1943 = vsel %vm1006, %v1687, 0
    %v1946 = vsel %vm1006, %v1692, 0
    %1948 = vmatprep.subr.mxu0 0.0
    %1949 = vmatpush1.msra.mxu0 0.0
    %1950 = vmatprep.subr.mxu0 0.0
    %1951 = vmatpush1.msra.mxu0 0.0
    %1952 = vmatprep.subr.mxu0 0.0
    %1953 = vmatpush1.msra.mxu0 0.0
    %1954 = vmatprep.subr.mxu0 0.0
    %1955 = vmatpush1.msra.mxu0 0.0
    %1956 = vmatprep.subr.mxu0 0.0
    %1957 = vmatpush1.msra.mxu0 0.0
    %1958 = vmatprep.subr.mxu0 0.0
    %1959 = vmatpush1.msra.mxu0 0.0
    %1960 = vmatprep.subr.mxu0 0.0
    %1961 = vmatpush1.msra.mxu0 0.0
    %1962 = vmatprep.subr.mxu0 0.0
    %1963 = vmatpush1.msra.mxu0 0.0
    %1964 = vmatprep.subr.mxu0 0.0
    %1965 = vmatpush1.msra.mxu0 0.0
    %1966 = vmatprep.subr.mxu0 0.0
    %1967 = vmatpush1.msra.mxu0 0.0
    %1968 = vmatprep.subr.mxu0 0.0
    %1969 = vmatpush1.msra.mxu0 0.0
    %1970 = vmatprep.subr.mxu0 0.0
    %1971 = vmatpush1.msra.mxu0 0.0
    %1972 = vmatprep.subr.mxu0 0.0
    %1973 = vmatpush1.msra.mxu0 0.0
    %1974 = vmatprep.subr.mxu0 0.0
    %1975 = vmatpush1.msra.mxu0 0.0
    %1976 = vmatprep.subr.mxu0 0.0
    %1977 = vmatpush1.msra.mxu0 0.0
    %1978 = vmatprep.subr.mxu0 0.0
    %1979 = vmatpush1.msra.mxu0 %v1778
    %1980 = vmatprep.subr.mxu0 0.0
    %1981 = vmatpush2.msra.mxu0 0.0
    %1982 = vmatprep.subr.mxu0 0.0
    %1983 = vmatpush2.msra.mxu0 0.0
    %1984 = vmatprep.subr.mxu0 0.0
    %1985 = vmatpush2.msra.mxu0 0.0
    %1986 = vmatprep.subr.mxu0 0.0
    %1987 = vmatpush2.msra.mxu0 0.0
    %1988 = vmatprep.subr.mxu0 0.0
    %1989 = vmatpush2.msra.mxu0 0.0
    %1990 = vmatprep.subr.mxu0 0.0
    %1991 = vmatpush2.msra.mxu0 0.0
    %1992 = vmatprep.subr.mxu0 0.0
    %1993 = vmatpush2.msra.mxu0 0.0
    %1994 = vmatprep.subr.mxu0 0.0
    %1995 = vmatpush2.msra.mxu0 0.0
    %1996 = vmatprep.subr.mxu0 0.0
    %1997 = vmatpush2.msra.mxu0 0.0
    %1998 = vmatprep.subr.mxu0 0.0
    %1999 = vmatpush2.msra.mxu0 0.0
    %2000 = vmatprep.subr.mxu0 0.0
    %2001 = vmatpush2.msra.mxu0 0.0
    %2002 = vmatprep.subr.mxu0 0.0
    %2003 = vmatpush2.msra.mxu0 0.0
    %2004 = vmatprep.subr.mxu0 0.0
    %2005 = vmatpush2.msra.mxu0 0.0
    %2006 = vmatprep.subr.mxu0 0.0
    %2007 = vmatpush2.msra.mxu0 0.0
    %2008 = vmatprep.subr.mxu0 0.0
    %2009 = vmatpush2.msra.mxu0 0.0
    %2010 = vmatprep.subr.mxu0 0.0
    %2011 = vmatpush2.msra.mxu0 0.0
    %2012 = vmatprep.mubr.f32.mxu0 0.0
    %2013 = vmatmul.mubr.f32.gmra.mxu0 %v1943
    %v2014 = vpop.f32.mrf.mxu0
    %v2015 = vadd.f32 0.0, %v2014
    %v2016 = vpop.f32.mrf.mxu0
    %2017 = vmatprep.mubr.f32.mxu0 0.0
    %2018 = vmatmul.mubr.f32.gmra.mxu0 %v1946
    %v2019 = vpop.f32.mrf.mxu0
    %v2020 = vadd.f32 0.0, %v2019
    %v2021 = vpop.f32.mrf.mxu0
    %2022 = vdwg.mxu0
    %v2024 = vsel %vm1006, %v1768, 0
    %v2027 = vsel %vm1006, %v1773, 0
    %2029 = vmatprep.subr.mxu0 0.0
    %2030 = vmatpush1.msra.mxu0 0.0
    %2031 = vmatprep.subr.mxu0 0.0
    %2032 = vmatpush1.msra.mxu0 0.0
    %2033 = vmatprep.subr.mxu0 0.0
    %2034 = vmatpush1.msra.mxu0 0.0
    %2035 = vmatprep.subr.mxu0 0.0
    %2036 = vmatpush1.msra.mxu0 0.0
    %2037 = vmatprep.subr.mxu0 0.0
    %2038 = vmatpush1.msra.mxu0 0.0
    %2039 = vmatprep.subr.mxu0 0.0
    %2040 = vmatpush1.msra.mxu0 0.0
    %2041 = vmatprep.subr.mxu0 0.0
    %2042 = vmatpush1.msra.mxu0 0.0
    %2043 = vmatprep.subr.mxu0 0.0
    %2044 = vmatpush1.msra.mxu0 0.0
    %2045 = vmatprep.subr.mxu0 0.0
    %2046 = vmatpush1.msra.mxu0 0.0
    %2047 = vmatprep.subr.mxu0 0.0
    %2048 = vmatpush1.msra.mxu0 0.0
    %2049 = vmatprep.subr.mxu0 0.0
    %2050 = vmatpush1.msra.mxu0 0.0
    %2051 = vmatprep.subr.mxu0 0.0
    %2052 = vmatpush1.msra.mxu0 0.0
    %2053 = vmatprep.subr.mxu0 0.0
    %2054 = vmatpush1.msra.mxu0 0.0
    %2055 = vmatprep.subr.mxu0 0.0
    %2056 = vmatpush1.msra.mxu0 0.0
    %2057 = vmatprep.subr.mxu0 0.0
    %2058 = vmatpush1.msra.mxu0 0.0
    %2059 = vmatprep.subr.mxu0 0.0
    %2060 = vmatpush1.msra.mxu0 %v1779
    %2061 = vmatprep.subr.mxu0 0.0
    %2062 = vmatpush2.msra.mxu0 0.0
    %2063 = vmatprep.subr.mxu0 0.0
    %2064 = vmatpush2.msra.mxu0 0.0
    %2065 = vmatprep.subr.mxu0 0.0
    %2066 = vmatpush2.msra.mxu0 0.0
    %2067 = vmatprep.subr.mxu0 0.0
    %2068 = vmatpush2.msra.mxu0 0.0
    %2069 = vmatprep.subr.mxu0 0.0
    %2070 = vmatpush2.msra.mxu0 0.0
    %2071 = vmatprep.subr.mxu0 0.0
    %2072 = vmatpush2.msra.mxu0 0.0
    %2073 = vmatprep.subr.mxu0 0.0
    %2074 = vmatpush2.msra.mxu0 0.0
    %2075 = vmatprep.subr.mxu0 0.0
    %2076 = vmatpush2.msra.mxu0 0.0
    %2077 = vmatprep.subr.mxu0 0.0
    %2078 = vmatpush2.msra.mxu0 0.0
    %2079 = vmatprep.subr.mxu0 0.0
    %2080 = vmatpush2.msra.mxu0 0.0
    %2081 = vmatprep.subr.mxu0 0.0
    %2082 = vmatpush2.msra.mxu0 0.0
    %2083 = vmatprep.subr.mxu0 0.0
    %2084 = vmatpush2.msra.mxu0 0.0
    %2085 = vmatprep.subr.mxu0 0.0
    %2086 = vmatpush2.msra.mxu0 0.0
    %2087 = vmatprep.subr.mxu0 0.0
    %2088 = vmatpush2.msra.mxu0 0.0
    %2089 = vmatprep.subr.mxu0 0.0
    %2090 = vmatpush2.msra.mxu0 0.0
    %2091 = vmatprep.subr.mxu0 0.0
    %2092 = vmatpush2.msra.mxu0 0.0
    %2093 = vmatprep.mubr.f32.mxu0 0.0
    %2094 = vmatmul.mubr.f32.gmra.mxu0 %v2024
    %v2095 = vpop.f32.mrf.mxu0
    %v2096 = vadd.f32 0.0, %v2095
    %v2097 = vpop.f32.mrf.mxu0
    %2098 = vmatprep.mubr.f32.mxu0 0.0
    %2099 = vmatmul.mubr.f32.gmra.mxu0 %v2027
    %v2100 = vpop.f32.mrf.mxu0
    %v2101 = vadd.f32 0.0, %v2100
    %v2102 = vpop.f32.mrf.mxu0
    %2103 = vdwg.mxu0
    %v2104 = vadd.f32 %v1853, %v1934
    %v2105 = vadd.f32 %v1858, %v1939
    %v2106 = vadd.f32 %v2104, %v2015
    %v2107 = vadd.f32 %v2105, %v2020
    %v2108 = vadd.f32 %v2106, %v2096
    %v2109 = vadd.f32 %v2107, %v2101
    %v2110 = vadd.f32 %v30, %v2108
    %v2111 = vadd.f32 %v31, %v2109
    %v2112 = vmul.f32 %v2110, %v2110
    %v2113 = vmul.f32 %v2111, %v2111
    %v2114 = vsel %vm36, %v2112, 0.0
    %2115 = vadd.xlane.f32.xlu0 %v2114
    %v2116 = vpop.xlane.xlu0 %2115
    %v2117 = vsel %vm36, %v2113, 0.0
    %2118 = vadd.xlane.f32.xlu0 %v2117
    %v2119 = vpop.xlane.xlu0 %2118
    %v2120 = vmul.f32 %v2116, %v43
    %v2121 = vmul.f32 %v2119, %v43
    %v2122 = vadd.f32 %v2120, 1e-06
    %v2123 = vadd.f32 %v2121, 1e-06
    %v2124 = vrsqrt.pop %v2122
    %v2125 = vrsqrt.pop %v2123
    %v2126 = vmul.f32 %v2110, %v2124
    %v2127 = vmul.f32 %v2111, %v2125
    %v2128 = vld [vmem:[%s6] sm:$0xff]
    %v2129 = vld [vmem:[%s6 + $0x8] sm:$0xff]
    %v2130 = vld [vmem:[%s6 + $0x10] sm:$0xff]
    %v2131 = vld [vmem:[%s6 + $0x18] sm:$0xff]
    %v2133 = vsel %vm36, %v2126, 0
    %v2136 = vsel %vm36, %v2127, 0
    %2138 = vmatprep.subr.mxu0 0.0
    %2139 = vmatpush1.msra.mxu0 0.0
    %2140 = vmatprep.subr.mxu0 0.0
    %2141 = vmatpush1.msra.mxu0 0.0
    %2142 = vmatprep.subr.mxu0 0.0
    %2143 = vmatpush1.msra.mxu0 0.0
    %2144 = vmatprep.subr.mxu0 0.0
    %2145 = vmatpush1.msra.mxu0 0.0
    %2146 = vmatprep.subr.mxu0 0.0
    %2147 = vmatpush1.msra.mxu0 0.0
    %2148 = vmatprep.subr.mxu0 0.0
    %2149 = vmatpush1.msra.mxu0 0.0
    %2150 = vmatprep.subr.mxu0 0.0
    %2151 = vmatpush1.msra.mxu0 0.0
    %2152 = vmatprep.subr.mxu0 0.0
    %2153 = vmatpush1.msra.mxu0 0.0
    %2154 = vmatprep.subr.mxu0 0.0
    %2155 = vmatpush1.msra.mxu0 0.0
    %2156 = vmatprep.subr.mxu0 0.0
    %2157 = vmatpush1.msra.mxu0 0.0
    %2158 = vmatprep.subr.mxu0 0.0
    %2159 = vmatpush1.msra.mxu0 0.0
    %2160 = vmatprep.subr.mxu0 0.0
    %2161 = vmatpush1.msra.mxu0 0.0
    %2162 = vmatprep.subr.mxu0 0.0
    %2163 = vmatpush1.msra.mxu0 %v2131
    %2164 = vmatprep.subr.mxu0 0.0
    %2165 = vmatpush1.msra.mxu0 %v2130
    %2166 = vmatprep.subr.mxu0 0.0
    %2167 = vmatpush1.msra.mxu0 %v2129
    %2168 = vmatprep.subr.mxu0 0.0
    %2169 = vmatpush1.msra.mxu0 %v2128
    %2170 = vmatprep.subr.mxu0 0.0
    %2171 = vmatpush2.msra.mxu0 0.0
    %2172 = vmatprep.subr.mxu0 0.0
    %2173 = vmatpush2.msra.mxu0 0.0
    %2174 = vmatprep.subr.mxu0 0.0
    %2175 = vmatpush2.msra.mxu0 0.0
    %2176 = vmatprep.subr.mxu0 0.0
    %2177 = vmatpush2.msra.mxu0 0.0
    %2178 = vmatprep.subr.mxu0 0.0
    %2179 = vmatpush2.msra.mxu0 0.0
    %2180 = vmatprep.subr.mxu0 0.0
    %2181 = vmatpush2.msra.mxu0 0.0
    %2182 = vmatprep.subr.mxu0 0.0
    %2183 = vmatpush2.msra.mxu0 0.0
    %2184 = vmatprep.subr.mxu0 0.0
    %2185 = vmatpush2.msra.mxu0 0.0
    %2186 = vmatprep.subr.mxu0 0.0
    %2187 = vmatpush2.msra.mxu0 0.0
    %2188 = vmatprep.subr.mxu0 0.0
    %2189 = vmatpush2.msra.mxu0 0.0
    %2190 = vmatprep.subr.mxu0 0.0
    %2191 = vmatpush2.msra.mxu0 0.0
    %2192 = vmatprep.subr.mxu0 0.0
    %2193 = vmatpush2.msra.mxu0 0.0
    %2194 = vmatprep.subr.mxu0 0.0
    %2195 = vmatpush2.msra.mxu0 0.0
    %2196 = vmatprep.subr.mxu0 0.0
    %2197 = vmatpush2.msra.mxu0 0.0
    %2198 = vmatprep.subr.mxu0 0.0
    %2199 = vmatpush2.msra.mxu0 0.0
    %2200 = vmatprep.subr.mxu0 0.0
    %2201 = vmatpush2.msra.mxu0 0.0
    %2202 = vmatprep.mubr.f32.mxu0 0.0
    %2203 = vmatmul.mubr.f32.gmra.mxu0 %v2133
    %v2204 = vpop.f32.mrf.mxu0
    %v2205 = vadd.f32 0.0, %v2204
    %v2206 = vpop.f32.mrf.mxu0
    %2207 = vmatprep.mubr.f32.mxu0 0.0
    %2208 = vmatmul.mubr.f32.gmra.mxu0 %v2136
    %v2209 = vpop.f32.mrf.mxu0
    %v2210 = vadd.f32 0.0, %v2209
    %v2211 = vpop.f32.mrf.mxu0
    %2212 = vdwg.mxu0
    %v2213 = vxor.u32 %v2205, 2147483648
    %v2214 = vxor.u32 %v2210, 2147483648
    %v2215 = vmul.f32 %v2213, 1.442695
    %v2216 = vpow.pop %v2215
    %v2217 = vmul.f32 %v2214, 1.442695
    %v2218 = vpow.pop %v2217
    %v2219 = vadd.f32 %v2216, 1.0
    %v2220 = vadd.f32 %v2218, 1.0
    %v2221 = vrcp.pop %v2219
    %v2222 = vmul.f32 1.0, %v2221
    %v2223 = vrcp.pop %v2220
    %v2224 = vmul.f32 1.0, %v2223
    %v2225 = vmul.f32 %v2205, %v2222
    %v2226 = vmul.f32 %v2210, %v2224
    %v2227 = vld [vmem:[%s7] sm:$0xff]
    %v2228 = vld [vmem:[%s7 + $0x8] sm:$0xff]
    %v2229 = vld [vmem:[%s7 + $0x10] sm:$0xff]
    %v2230 = vld [vmem:[%s7 + $0x18] sm:$0xff]
    %v2231 = vld [vmem:[%s7 + $0x20] sm:$0xff]
    %v2232 = vld [vmem:[%s7 + $0x28] sm:$0xff]
    %v2233 = vld [vmem:[%s7 + $0x30] sm:$0xff]
    %v2234 = vld [vmem:[%s7 + $0x38] sm:$0xff]
    %v2235 = vld [vmem:[%s7 + $0x40] sm:$0xff]
    %v2236 = vld [vmem:[%s7 + $0x48] sm:$0xff]
    %v2237 = vld [vmem:[%s7 + $0x50] sm:$0xff]
    %v2238 = vld [vmem:[%s7 + $0x58] sm:$0xff]
    %v2239 = vld [vmem:[%s7 + $0x60] sm:$0xff]
    %v2240 = vld [vmem:[%s7 + $0x68] sm:$0xff]
    %v2241 = vld [vmem:[%s7 + $0x70] sm:$0xff]
    %v2242 = vld [vmem:[%s7 + $0x78] sm:$0xff]
    %2243 = vmatprep.subr.mxu0 0.0
    %2244 = vmatpush1.msra.mxu0 %v2242
    %2245 = vmatprep.subr.mxu0 0.0
    %2246 = vmatpush1.msra.mxu0 %v2241
    %2247 = vmatprep.subr.mxu0 0.0
    %2248 = vmatpush1.msra.mxu0 %v2240
    %2249 = vmatprep.subr.mxu0 0.0
    %2250 = vmatpush1.msra.mxu0 %v2239
    %2251 = vmatprep.subr.mxu0 0.0
    %2252 = vmatpush1.msra.mxu0 %v2238
    %2253 = vmatprep.subr.mxu0 0.0
    %2254 = vmatpush1.msra.mxu0 %v2237
    %2255 = vmatprep.subr.mxu0 0.0
    %2256 = vmatpush1.msra.mxu0 %v2236
    %2257 = vmatprep.subr.mxu0 0.0
    %2258 = vmatpush1.msra.mxu0 %v2235
    %2259 = vmatprep.subr.mxu0 0.0
    %2260 = vmatpush1.msra.mxu0 %v2234
    %2261 = vmatprep.subr.mxu0 0.0
    %2262 = vmatpush1.msra.mxu0 %v2233
    %2263 = vmatprep.subr.mxu0 0.0
    %2264 = vmatpush1.msra.mxu0 %v2232
    %2265 = vmatprep.subr.mxu0 0.0
    %2266 = vmatpush1.msra.mxu0 %v2231
    %2267 = vmatprep.subr.mxu0 0.0
    %2268 = vmatpush1.msra.mxu0 %v2230
    %2269 = vmatprep.subr.mxu0 0.0
    %2270 = vmatpush1.msra.mxu0 %v2229
    %2271 = vmatprep.subr.mxu0 0.0
    %2272 = vmatpush1.msra.mxu0 %v2228
    %2273 = vmatprep.subr.mxu0 0.0
    %2274 = vmatpush1.msra.mxu0 %v2227
    %2275 = vmatprep.subr.mxu0 0.0
    %2276 = vmatpush2.msra.mxu0 0.0
    %2277 = vmatprep.subr.mxu0 0.0
    %2278 = vmatpush2.msra.mxu0 0.0
    %2279 = vmatprep.subr.mxu0 0.0
    %2280 = vmatpush2.msra.mxu0 0.0
    %2281 = vmatprep.subr.mxu0 0.0
    %2282 = vmatpush2.msra.mxu0 0.0
    %2283 = vmatprep.subr.mxu0 0.0
    %2284 = vmatpush2.msra.mxu0 0.0
    %2285 = vmatprep.subr.mxu0 0.0
    %2286 = vmatpush2.msra.mxu0 0.0
    %2287 = vmatprep.subr.mxu0 0.0
    %2288 = vmatpush2.msra.mxu0 0.0
    %2289 = vmatprep.subr.mxu0 0.0
    %2290 = vmatpush2.msra.mxu0 0.0
    %2291 = vmatprep.subr.mxu0 0.0
    %2292 = vmatpush2.msra.mxu0 0.0
    %2293 = vmatprep.subr.mxu0 0.0
    %2294 = vmatpush2.msra.mxu0 0.0
    %2295 = vmatprep.subr.mxu0 0.0
    %2296 = vmatpush2.msra.mxu0 0.0
    %2297 = vmatprep.subr.mxu0 0.0
    %2298 = vmatpush2.msra.mxu0 0.0
    %2299 = vmatprep.subr.mxu0 0.0
    %2300 = vmatpush2.msra.mxu0 0.0
    %2301 = vmatprep.subr.mxu0 0.0
    %2302 = vmatpush2.msra.mxu0 0.0
    %2303 = vmatprep.subr.mxu0 0.0
    %2304 = vmatpush2.msra.mxu0 0.0
    %2305 = vmatprep.subr.mxu0 0.0
    %2306 = vmatpush2.msra.mxu0 0.0
    %2307 = vmatprep.mubr.f32.mxu0 0.0
    %2308 = vmatmul.mubr.f32.gmra.mxu0 %v2225
    %v2309 = vpop.f32.mrf.mxu0
    %v2310 = vadd.f32 0.0, %v2309
    %v2311 = vpop.f32.mrf.mxu0
    %2312 = vmatprep.mubr.f32.mxu0 0.0
    %2313 = vmatmul.mubr.f32.gmra.mxu0 %v2226
    %v2314 = vpop.f32.mrf.mxu0
    %v2315 = vadd.f32 0.0, %v2314
    %v2316 = vpop.f32.mrf.mxu0
    %2317 = vdwg.mxu0
    %v2318 = vadd.f32 %v2110, %v2310
    %v2319 = vadd.f32 %v2111, %v2315
    %2320 = vst.msk [vmem:[#allocation2] sm:$0xff] %vm36, %v2318
    %2321 = vst.msk [vmem:[#allocation2 + $0x8] sm:$0xff] %vm36, %v2319
    // Predicated region
    $region34: #{encoder_layer.1} parent=1 // pred_check
      _
    $region35: #{encoder_layer.1} parent=1 // pred_check_branch
      %2323 = sbr.rel (0) target = $region37
    $region36: #{encoder_layer.1} parent=1 // pred_region
      %s2325 = ssub.s32 256, 256
      %2326 = vsyncadd [#allocation3], %s2325
      %s2327 = sshll.u32 [#allocation2], 4
      %s2328 = int_to_ptr.vmem [resolvable:$true] %s2327
      %2333 = dma.vmem_to_hbm [thread:$0]  %s2328, 256, %s8, [#allocation3], 128, 128, 8
    $region37: #{encoder_layer.1} parent=1 // pred_fallthru
      _
    // Predicated region
    $region38: #{encoder_layer.1} parent=1 // pred_check
      _
    $region39: #{encoder_layer.1} parent=1 // pred_check_branch
      %2335 = sbr.rel (0) target = $region41
    $region40: #{encoder_layer.1} parent=1 // pred_region
      %2336 = dma.done [#allocation3], 256
    $region41: #{encoder_layer.1} parent=1 // pred_fallthru
      _
    %2337 = vsyncpa [#allocation3], 1

</llo_original>
